<compile_context>
chip_gen: v7x
topology: tpu7x:2x2x1
jax: 0.10.0
libtpu: 0.0.40
codegen_flags: <defaults>
</compile_context>

<pallas_src>
import jax
import jax.numpy as jnp
import numpy as np
from jax.experimental import pallas as pl
from jax.experimental.pallas import tpu as pltpu

OUT_H = 299
OUT_W = 299


# ---------------------------------------------------------------------------
# Host-side helpers (PyTorch bilinear, align_corners=False semantics)
# ---------------------------------------------------------------------------
def _src_coords(out_size, in_size):
    """PyTorch half-pixel source coords: src = (dst + 0.5) * in/out - 0.5, clamped at 0."""
    scale = in_size / out_size
    src = (np.arange(out_size, dtype=np.float64) + 0.5) * scale - 0.5
    src = np.maximum(src, 0.0)
    i0 = np.minimum(np.floor(src).astype(np.int64), in_size - 1)
    i1 = np.minimum(i0 + 1, in_size - 1)
    w1 = np.clip(src - i0, 0.0, 1.0)
    return i0, i1, w1


def _interp_matrix(out_size, in_size):
    """Dense (out_size, in_size) row-interpolation matrix (two non-zeros per row)."""
    i0, i1, w1 = _src_coords(out_size, in_size)
    m = np.zeros((out_size, in_size), dtype=np.float32)
    rows = np.arange(out_size)
    np.add.at(m, (rows, i0), 1.0 - w1)   # add.at handles i0 == i1 at the clamped edge
    np.add.at(m, (rows, i1), w1)
    return jnp.asarray(m)


def _bilinear_resize_ref(img, out_h, out_w):
    """Pure-JAX gather-based reference of F.interpolate(bilinear, align_corners=False)."""
    y0, y1, wy = _src_coords(out_h, img.shape[2])
    x0, x1, wx = _src_coords(out_w, img.shape[3])
    wy = jnp.asarray(wy, jnp.float32)[None, None, :, None]
    wx = jnp.asarray(wx, jnp.float32)[None, None, None, :]
    rows = img[:, :, y0, :] * (1.0 - wy) + img[:, :, y1, :] * wy
    return rows[:, :, :, x0] * (1.0 - wx) + rows[:, :, :, x1] * wx


# ---------------------------------------------------------------------------
# Pallas kernel: per (batch, channel) image -> normalize + separable bilinear resize
# ---------------------------------------------------------------------------
def preprocess_kernel(x_ref, ry_ref, rxt_ref, scale_ref, bias_ref, o_ref):
    # per-channel normalization (x - mean)/std as scale/bias on the small source image
    img = x_ref[0] * scale_ref[0] + bias_ref[0]                            # (H, W)
    # separable bilinear resize: Ry @ img @ Rx^T, both on the MXU, f32 accumulation
    rows = jnp.dot(ry_ref[...], img, preferred_element_type=jnp.float32)   # (OUT_H, W)
    o_ref[0] = jnp.dot(rows, rxt_ref[...],
                       preferred_element_type=jnp.float32)                 # (OUT_H, OUT_W)


def inception_preprocess(x, mean, std, out_hw=(OUT_H, OUT_W)):
    """x: (B, C, H, W). Returns the normalized, 299x299-resized (B, 3, oh, ow) f32 tensor
    that the (untranslated) pretrained Inception-v3 backbone would consume."""
    if x.shape[1] != 3:
        x = jnp.tile(x, (1, 3, 1, 1))          # mirrors torch `x.repeat(1, 3, 1, 1)`
    B, C, H, W = x.shape
    assert C == 3, "InceptionV3 preprocessing expects 3 channels after the repeat"
    out_h, out_w = out_hw

    # hoisted constants (interpolation matrices + per-image normalization scalars)
    ry = _interp_matrix(out_h, H)              # (out_h, H)
    rxt = _interp_matrix(out_w, W).T           # (W, out_w)
    scale = jnp.tile((1.0 / std).astype(jnp.float32), (B,)).reshape(B * C, 1, 1)
    bias = jnp.tile((-mean / std).astype(jnp.float32), (B,)).reshape(B * C, 1, 1)

    xf = x.reshape(B * C, H, W).astype(jnp.float32)

    out = pl.pallas_call(
        preprocess_kernel,
        out_shape=jax.ShapeDtypeStruct((B * C, out_h, out_w), jnp.float32),
        grid=(B * C,),
        in_specs=[
            pl.BlockSpec((1, H, W), lambda i: (i, 0, 0)),        # one image per step
            pl.BlockSpec((out_h, H), lambda i: (0, 0)),          # Ry, resident
            pl.BlockSpec((W, out_w), lambda i: (0, 0)),          # Rx^T, resident
            pl.BlockSpec((1, 1, 1), lambda i: (i, 0, 0)),        # per-image scale
            pl.BlockSpec((1, 1, 1), lambda i: (i, 0, 0)),        # per-image bias
        ],
        out_specs=pl.BlockSpec((1, out_h, out_w), lambda i: (i, 0, 0)),
        compiler_params=pltpu.CompilerParams(
            dimension_semantics=("parallel",)),                  # pipelined; v7x megacore
    )(xf, ry, rxt, scale, bias)

    return out.reshape(B, C, out_h, out_w)


if __name__ == "__main__":
    # small shapes: batch=2, 1 input channel (exercises the channel-repeat), 16x16 spatial
    B, C, H, W = 2, 1, 16, 16

    key = jax.random.PRNGKey(0)
    x = jax.random.uniform(key, (B, C, H, W), jnp.float32)   # image-like values in [0, 1)

    mean = jnp.array([0.485, 0.456, 0.406], jnp.float32)
    std = jnp.array([0.229, 0.224, 0.225], jnp.float32)

    out = jax.block_until_ready(inception_preprocess(x, mean, std))
    assert out.shape == (B, 3, OUT_H, OUT_W)

    # pure-JAX reference of the module's preprocessing (repeat -> normalize -> resize)
    x3 = jnp.tile(x, (1, 3, 1, 1)) if C != 3 else x
    xn = (x3 - mean.reshape(1, 3, 1, 1)) / std.reshape(1, 3, 1, 1)
    ref = _bilinear_resize_ref(xn, OUT_H, OUT_W)
    assert jnp.allclose(out, ref, atol=1e-4, rtol=1e-4)

    print("KERNEL_OK")
</pallas_src>

<mosaic_0001>
module attributes {stable_mosaic.version = 11 : i64} {
  func.func @preprocess_kernel(%arg0: i32, %arg1: memref<1x16x16xf32, #tpu.memory_space<vmem>>, %arg2: memref<299x16xf32, #tpu.memory_space<vmem>>, %arg3: memref<16x299xf32, #tpu.memory_space<vmem>>, %arg4: memref<1x1x1xf32, #tpu.memory_space<vmem>>, %arg5: memref<1x1x1xf32, #tpu.memory_space<vmem>>, %arg6: memref<1x299x299xf32, #tpu.memory_space<vmem>>) attributes {dimension_semantics = [#tpu.dimension_semantics<parallel>], iteration_bounds = array<i64: 6>, scalar_prefetch = 0 : i64, scratch_operands = 0 : i64, tpu.core_type = #tpu.core_type<tc>, window_params = [{transform_indices = @transform_0, window_bounds = array<i64: 1, 16, 16>}, {pipeline_mode = #tpu.pipeline_mode<synchronous>, transform_indices = @transform_1, window_bounds = array<i64: 299, 16>}, {pipeline_mode = #tpu.pipeline_mode<synchronous>, transform_indices = @transform_2, window_bounds = array<i64: 16, 299>}, {transform_indices = @transform_3, window_bounds = array<i64: 1, 1, 1>}, {transform_indices = @transform_4, window_bounds = array<i64: 1, 1, 1>}, {transform_indices = @transform_5, window_bounds = array<i64: 1, 299, 299>}]} {
    %c0 = arith.constant 0 : index
    %c0_0 = arith.constant 0 : index
    %c0_1 = arith.constant 0 : index
    %0 = vector.load %arg1[%c0, %c0_0, %c0_1] : memref<1x16x16xf32, #tpu.memory_space<vmem>>, vector<1x16x16xf32>
    %1 = vector.shape_cast %0 : vector<1x16x16xf32> to vector<16x16xf32>
    %c0_2 = arith.constant 0 : index
    %c0_3 = arith.constant 0 : index
    %c0_4 = arith.constant 0 : index
    %2 = vector.load %arg4[%c0_2, %c0_3, %c0_4] : memref<1x1x1xf32, #tpu.memory_space<vmem>>, vector<1x1x1xf32>
    %3 = vector.shape_cast %2 : vector<1x1x1xf32> to vector<1x1xf32>
    %4 = vector.broadcast %3 : vector<1x1xf32> to vector<16x16xf32>
    %5 = arith.mulf %1, %4 : vector<16x16xf32>
    %c0_5 = arith.constant 0 : index
    %c0_6 = arith.constant 0 : index
    %c0_7 = arith.constant 0 : index
    %6 = vector.load %arg5[%c0_5, %c0_6, %c0_7] : memref<1x1x1xf32, #tpu.memory_space<vmem>>, vector<1x1x1xf32>
    %7 = vector.shape_cast %6 : vector<1x1x1xf32> to vector<1x1xf32>
    %8 = vector.broadcast %7 : vector<1x1xf32> to vector<16x16xf32>
    %9 = arith.addf %5, %8 : vector<16x16xf32>
    %c0_8 = arith.constant 0 : index
    %c0_9 = arith.constant 0 : index
    %10 = vector.load %arg2[%c0_8, %c0_9] : memref<299x16xf32, #tpu.memory_space<vmem>>, vector<299x16xf32>
    %cst = arith.constant dense<0.000000e+00> : vector<299x16xf32>
    %11 = tpu.matmul %10, %9, %cst {dimension_numbers = #tpu.dot_dimension_numbers<[1], [0], [0], [1], [0, 0, 1, 1], [], []>} : vector<299x16xf32>, vector<16x16xf32>, vector<299x16xf32> -> vector<299x16xf32>
    %c0_10 = arith.constant 0 : index
    %c0_11 = arith.constant 0 : index
    %12 = vector.load %arg3[%c0_10, %c0_11] : memref<16x299xf32, #tpu.memory_space<vmem>>, vector<16x299xf32>
    %cst_12 = arith.constant dense<0.000000e+00> : vector<299x299xf32>
    %13 = tpu.matmul %11, %12, %cst_12 {dimension_numbers = #tpu.dot_dimension_numbers<[1], [0], [0], [1], [0, 0, 1, 1], [], []>} : vector<299x16xf32>, vector<16x299xf32>, vector<299x299xf32> -> vector<299x299xf32>
    %c0_13 = arith.constant 0 : index
    %c0_14 = arith.constant 0 : index
    %c0_15 = arith.constant 0 : index
    %14 = vector.load %arg6[%c0_13, %c0_14, %c0_15] : memref<1x299x299xf32, #tpu.memory_space<vmem>>, vector<1x299x299xf32>
    %15 = vector.shape_cast %14 : vector<1x299x299xf32> to vector<299x299xf32>
    %16 = vector.shape_cast %13 : vector<299x299xf32> to vector<1x299x299xf32>
    tpu.vector_store %arg6[%c0_13, %c0_14, %c0_15], %16 {strides = array<i32>} : memref<1x299x299xf32, #tpu.memory_space<vmem>>, vector<1x299x299xf32>,
    return
  }
  func.func @transform_0(%arg0: i32) -> (i32, i32, i32) {
    %c0_i32 = arith.constant 0 : i32
    %c0_i32_0 = arith.constant 0 : i32
    %c0_i32_1 = arith.constant 0 : i32
    return %arg0, %c0_i32, %c0_i32_0 : i32, i32, i32
  }
  func.func @transform_1(%arg0: i32) -> (i32, i32) {
    %c0_i32 = arith.constant 0 : i32
    %c0_i32_0 = arith.constant 0 : i32
    %c0_i32_1 = arith.constant 0 : i32
    return %c0_i32, %c0_i32_0 : i32, i32
  }
  func.func @transform_2(%arg0: i32) -> (i32, i32) {
    %c0_i32 = arith.constant 0 : i32
    %c0_i32_0 = arith.constant 0 : i32
    %c0_i32_1 = arith.constant 0 : i32
    return %c0_i32, %c0_i32_0 : i32, i32
  }
  func.func @transform_3(%arg0: i32) -> (i32, i32, i32) {
    %c0_i32 = arith.constant 0 : i32
    %c0_i32_0 = arith.constant 0 : i32
    %c0_i32_1 = arith.constant 0 : i32
    return %arg0, %c0_i32, %c0_i32_0 : i32, i32, i32
  }
  func.func @transform_4(%arg0: i32) -> (i32, i32, i32) {
    %c0_i32 = arith.constant 0 : i32
    %c0_i32_0 = arith.constant 0 : i32
    %c0_i32_1 = arith.constant 0 : i32
    return %arg0, %c0_i32, %c0_i32_0 : i32, i32, i32
  }
  func.func @transform_5(%arg0: i32) -> (i32, i32, i32) {
    %c0_i32 = arith.constant 0 : i32
    %c0_i32_0 = arith.constant 0 : i32
    %c0_i32_1 = arith.constant 0 : i32
    return %arg0, %c0_i32, %c0_i32_0 : i32, i32, i32
  }
}

</mosaic_0001>

<llo_original>
// kernel: tpu_custom_call.1
$region0: #{tpu_custom_call.1}
  #allocation0 [shape = 'u32[]', space=smem, size = 0x4, offset = 0x4, fixed_abs, tag = 'smem constant byte address 0x4 - core index']
  #allocation1 [shape = 'u32[144,128]{1,0:T(1,128)}', space=vmem, size = 0x12000, scoped, tag = 'internal scratch']
  %s0 = inlined_call_operand.hbm [shape: f32[6,16,16], index: 0, kind: input, shape index: {}]
  %s1 = inlined_call_operand.vmem [shape: f32[299,16], index: 1, kind: input, shape index: {}]
  %s2 = inlined_call_operand.hbm [shape: f32[16,299], index: 2, kind: input, shape index: {}]
  %s3 = inlined_call_operand.vmem [shape: f32[6,1,1], index: 3, kind: input, shape index: {}]
  %s4 = inlined_call_operand.vmem [shape: f32[6,1,1], index: 4, kind: input, shape index: {}]
  %s5 = inlined_call_operand.hbm [shape: f32[6,299,299], index: 5, kind: output, shape index: {}]
  %s6 = sld [smem:[#allocation0]]
  $region61: #{tpu_custom_call.1} parent=0
    _
  %s8 = ssub.s32 1, %s6
  %s9 = scalar_select 0, %s8, %s6
  $region1: #{tpu_custom_call.1} parent=0
    #allocation2 [shape = 'u8[16384]{0}', space=vmem, size = 0x4000, scoped, tag = 'input window, operand 0']
    #allocation3 [shape = 's32[2]{0}', space=sflag, size = 0x8, scoped, tag = 'scoped memory for tpu_custom_call.1']
    #allocation4 [shape = 's32[2]{0}', space=sflag, size = 0x8, scoped, tag = 'scoped memory for tpu_custom_call.1']
    #allocation5 [shape = 'u8[24576]{0}', space=vmem, size = 0x6000, scoped, tag = 'input window, operand 2, single buffered']
    #allocation6 [shape = 's32[1]{0}', space=sflag, size = 0x4, scoped, tag = 'scoped memory for tpu_custom_call.1']
    #allocation7 [shape = 'u8[933888]{0}', space=vmem, size = 0xe4000, scoped, tag = 'output window, operand 0']
    %10 = vsyncpa [#allocation3], 0
    %s11 = scalar_lea.sflag [#allocation3], 1
    %12 = vsyncpa %s11, 0
    %13 = vsyncpa [#allocation6], 0
    %14 = vsyncpa [#allocation4], 0
    %s15 = scalar_lea.sflag [#allocation4], 1
    %16 = vsyncpa %s15, 0
    loop: start=0, step=1, limit=8
    $region2: #{tpu_custom_call.1} parent=1 // loop_pre_header
      _
    $region3: #{tpu_custom_call.1} parent=1 // loop_header
      %s18 = sphi 0, %s22
      %p19 = scmp.ge.s32.totalorder %s18, 8
      %s28 = sphi 0, %s30
      %s31 = sphi 0, %s28
      %s32 = sphi 0, %s31
      %s48 = sphi 0, %s32
      %s52 = sphi 0, %s52
      %s54 = sphi 0, %s52
      %s55 = sphi 0, %s54
      %s69 = sphi 0, %s55
      %s73 = sphi 0, %s73
      %s75 = sphi 0, %s73
      %s76 = sphi 0, %s75
      %s90 = sphi 0, %s76
      %s96 = sphi 0, %s98
      %s99 = sphi 0, %s96
      %s100 = sphi 0, %s99
      %s116 = sphi 0, %s100
      %s122 = sphi 0, %s124
      %s125 = sphi 0, %s122
      %s126 = sphi 0, %s125
      %s142 = sphi 0, %s126
      %s148 = sphi 0, %s150
      %s151 = sphi 0, %s148
      %s152 = sphi 0, %s151
      %s168 = sphi 0, %s152
    $region4: #{tpu_custom_call.1} parent=1 // loop_header_branch
      %21 = sbr.rel (%p19) target = $region8
    $region5: #{tpu_custom_call.1} parent=1 // loop_body
      %s23 = ssub.s32 %s18, 1
      %s24 = ssub.s32 %s18, 2
      %s25 = sadd.s32 %s18, 1
      %s26 = ssub.s32 %s18, %s25
      %p27 = scmp.eq.s32.totalorder %s26, 0
      %s29 = sadd.s32 %s28, 1
      %s30 = scalar_select %p27, %s28, %s29
      %p33 = pneg %p27
      %p34 = scmp.eq.s32.totalorder %s18, 5
      %p35 = por %p33, %p34
      %p36 = scmp.ne.s32.totalorder %s28, %s31
      %p37 = scmp.eq.s32.totalorder %s18, 0
      %p38 = por %p36, %p37
      %p39 = scmp.ne.s32.totalorder %s28, %s31
      %p40 = scmp.eq.s32.totalorder %s23, 5
      %p41 = por %p39, %p40
      %p42 = scmp.ne.s32.totalorder %s31, %s32
      %p43 = scmp.eq.s32.totalorder %s23, 0
      %p44 = por %p42, %p43
      %p45 = scmp.ne.s32.totalorder %s31, %s32
      %p46 = scmp.eq.s32.totalorder %s24, 5
      %p47 = por %p45, %p46
      %p49 = scmp.ne.s32.totalorder %s32, %s48
      %p50 = scmp.eq.s32.totalorder %s24, 0
      %p51 = por %p49, %p50
      %s53 = sadd.s32 %s52, 1
      %p56 = scmp.eq.s32.totalorder %s18, 5
      %p57 = scmp.ne.s32.totalorder %s52, %s54
      %p58 = scmp.eq.s32.totalorder %s18, 0
      %p59 = por %p57, %p58
      %p60 = scmp.ne.s32.totalorder %s52, %s54
      %p61 = scmp.eq.s32.totalorder %s23, 5
      %p62 = por %p60, %p61
      %p63 = scmp.ne.s32.totalorder %s54, %s55
      %p64 = scmp.eq.s32.totalorder %s23, 0
      %p65 = por %p63, %p64
      %p66 = scmp.ne.s32.totalorder %s54, %s55
      %p67 = scmp.eq.s32.totalorder %s24, 5
      %p68 = por %p66, %p67
      %p70 = scmp.ne.s32.totalorder %s55, %s69
      %p71 = scmp.eq.s32.totalorder %s24, 0
      %p72 = por %p70, %p71
      %s74 = sadd.s32 %s73, 1
      %p77 = scmp.eq.s32.totalorder %s18, 5
      %p78 = scmp.ne.s32.totalorder %s73, %s75
      %p79 = scmp.eq.s32.totalorder %s18, 0
      %p80 = por %p78, %p79
      %p81 = scmp.ne.s32.totalorder %s73, %s75
      %p82 = scmp.eq.s32.totalorder %s23, 5
      %p83 = por %p81, %p82
      %p84 = scmp.ne.s32.totalorder %s75, %s76
      %p85 = scmp.eq.s32.totalorder %s23, 0
      %p86 = por %p84, %p85
      %p87 = scmp.ne.s32.totalorder %s75, %s76
      %p88 = scmp.eq.s32.totalorder %s24, 5
      %p89 = por %p87, %p88
      %p91 = scmp.ne.s32.totalorder %s76, %s90
      %p92 = scmp.eq.s32.totalorder %s24, 0
      %p93 = por %p91, %p92
      %s94 = ssub.s32 %s18, %s25
      %p95 = scmp.eq.s32.totalorder %s94, 0
      %s97 = sadd.s32 %s96, 1
      %s98 = scalar_select %p95, %s96, %s97
      %p101 = pneg %p95
      %p102 = scmp.eq.s32.totalorder %s18, 5
      %p103 = por %p101, %p102
      %p104 = scmp.ne.s32.totalorder %s96, %s99
      %p105 = scmp.eq.s32.totalorder %s18, 0
      %p106 = por %p104, %p105
      %p107 = scmp.ne.s32.totalorder %s96, %s99
      %p108 = scmp.eq.s32.totalorder %s23, 5
      %p109 = por %p107, %p108
      %p110 = scmp.ne.s32.totalorder %s99, %s100
      %p111 = scmp.eq.s32.totalorder %s23, 0
      %p112 = por %p110, %p111
      %p113 = scmp.ne.s32.totalorder %s99, %s100
      %p114 = scmp.eq.s32.totalorder %s24, 5
      %p115 = por %p113, %p114
      %p117 = scmp.ne.s32.totalorder %s100, %s116
      %p118 = scmp.eq.s32.totalorder %s24, 0
      %p119 = por %p117, %p118
      %s120 = ssub.s32 %s18, %s25
      %p121 = scmp.eq.s32.totalorder %s120, 0
      %s123 = sadd.s32 %s122, 1
      %s124 = scalar_select %p121, %s122, %s123
      %p127 = pneg %p121
      %p128 = scmp.eq.s32.totalorder %s18, 5
      %p129 = por %p127, %p128
      %p130 = scmp.ne.s32.totalorder %s122, %s125
      %p131 = scmp.eq.s32.totalorder %s18, 0
      %p132 = por %p130, %p131
      %p133 = scmp.ne.s32.totalorder %s122, %s125
      %p134 = scmp.eq.s32.totalorder %s23, 5
      %p135 = por %p133, %p134
      %p136 = scmp.ne.s32.totalorder %s125, %s126
      %p137 = scmp.eq.s32.totalorder %s23, 0
      %p138 = por %p136, %p137
      %p139 = scmp.ne.s32.totalorder %s125, %s126
      %p140 = scmp.eq.s32.totalorder %s24, 5
      %p141 = por %p139, %p140
      %p143 = scmp.ne.s32.totalorder %s126, %s142
      %p144 = scmp.eq.s32.totalorder %s24, 0
      %p145 = por %p143, %p144
      %s146 = ssub.s32 %s18, %s25
      %p147 = scmp.eq.s32.totalorder %s146, 0
      %s149 = sadd.s32 %s148, 1
      %s150 = scalar_select %p147, %s148, %s149
      %p153 = pneg %p147
      %p154 = scmp.eq.s32.totalorder %s18, 5
      %p155 = por %p153, %p154
      %p156 = scmp.ne.s32.totalorder %s148, %s151
      %p157 = scmp.eq.s32.totalorder %s18, 0
      %p158 = por %p156, %p157
      %p159 = scmp.ne.s32.totalorder %s148, %s151
      %p160 = scmp.eq.s32.totalorder %s23, 5
      %p161 = por %p159, %p160
      %p162 = scmp.ne.s32.totalorder %s151, %s152
      %p163 = scmp.eq.s32.totalorder %s23, 0
      %p164 = por %p162, %p163
      %p165 = scmp.ne.s32.totalorder %s151, %s152
      %p166 = scmp.eq.s32.totalorder %s24, 5
      %p167 = por %p165, %p166
      %p169 = scmp.ne.s32.totalorder %s152, %s168
      %p170 = scmp.eq.s32.totalorder %s24, 0
      %p171 = por %p169, %p170
      %p172 = scmp.le.s32.totalorder 1, %s18
      %p173 = scmp.lt.s32.totalorder %s18, 7
      %p174 = pnand %p172, %p173
      %p175 = pneg %p174
      // Predicated region
      $region9: #{tpu_custom_call.1} parent=5 // pred_check
        _
      $region10: #{tpu_custom_call.1} parent=5 // pred_check_branch
        %177 = sbr.rel (%p174) target = $region12
      $region11: #{tpu_custom_call.1} parent=5 // pred_region
        %s178 = ssub.s32 %s18, 1
        // Predicated region
        $region13: #{tpu_custom_call.1} parent=11 // pred_check
          %p179 = pneg %p65
        $region14: #{tpu_custom_call.1} parent=11 // pred_check_branch
          %181 = sbr.rel (%p179) target = $region16
        $region15: #{tpu_custom_call.1} parent=11 // pred_region
          _
        $region16: #{tpu_custom_call.1} parent=11 // pred_fallthru
          _
        // Predicated region
        $region17: #{tpu_custom_call.1} parent=11 // pred_check
          %p182 = pneg %p86
        $region18: #{tpu_custom_call.1} parent=11 // pred_check_branch
          %184 = sbr.rel (%p182) target = $region20
        $region19: #{tpu_custom_call.1} parent=11 // pred_region
          %s186 = ssub.s32 768, 768
          %187 = vsyncadd [#allocation6], %s186
          %s188 = sshll.u32 [#allocation5], 4
          %s189 = int_to_ptr.vmem [resolvable:$true] %s188
          %194 = dma.hbm_to_vmem [thread:$0]  %s2, 768, %s189, [#allocation6], 384, 384, 24
        $region20: #{tpu_custom_call.1} parent=11 // pred_fallthru
          _
      $region12: #{tpu_custom_call.1} parent=5 // pred_fallthru
        _
      %p195 = scmp.lt.s32.totalorder %s18, 6
      // Predicated region
      $region21: #{tpu_custom_call.1} parent=5 // pred_check
        %p196 = pneg %p195
      $region22: #{tpu_custom_call.1} parent=5 // pred_check_branch
        %198 = sbr.rel (%p196) target = $region24
      $region23: #{tpu_custom_call.1} parent=5 // pred_region
        // Predicated region
        $region25: #{tpu_custom_call.1} parent=23 // pred_check
          %p199 = pneg %p38
        $region26: #{tpu_custom_call.1} parent=23 // pred_check_branch
          %201 = sbr.rel (%p199) target = $region28
        $region27: #{tpu_custom_call.1} parent=23 // pred_region
          %s202 = sand.u32 %s28, 1
          %s203 = scalar_lea.sflag [#allocation3], %s202
          %s204 = sand.u32 %s28, 1
          %s205 = smul.addr %s204, 16
          %s206 = scalar_lea.vmem [#allocation2], %s205
          %s208 = ssub.s32 256, 256
          %209 = vsyncadd %s203, %s208
          %s210 = smul.addr %s18, 2
          %s211 = smul.addr %s210, 128
          %s212 = scalar_lea.hbm %s0, %s211
          %s213 = sshll.u32 %s206, 4
          %s214 = int_to_ptr.vmem [resolvable:$true] %s213
          %219 = dma.hbm_to_vmem [thread:$0]  %s212, 256, %s214, %s203, 128, 128, 8
        $region28: #{tpu_custom_call.1} parent=23 // pred_fallthru
          _
        // Predicated region
        $region29: #{tpu_custom_call.1} parent=23 // pred_check
          %p220 = pneg %p106
        $region30: #{tpu_custom_call.1} parent=23 // pred_check_branch
          %222 = sbr.rel (%p220) target = $region32
        $region31: #{tpu_custom_call.1} parent=23 // pred_region
          %p223 = scmp.lt.s32.totalorder %s18, 5
          %s224 = scalar_select %p223, %s18, 5
          %s225 = scalar_lea.vmem %s3, %s224
        $region32: #{tpu_custom_call.1} parent=23 // pred_fallthru
          _
        // Predicated region
        $region33: #{tpu_custom_call.1} parent=23 // pred_check
          %p226 = pneg %p132
        $region34: #{tpu_custom_call.1} parent=23 // pred_check_branch
          %228 = sbr.rel (%p226) target = $region36
        $region35: #{tpu_custom_call.1} parent=23 // pred_region
          %p229 = scmp.lt.s32.totalorder %s18, 5
          %s230 = scalar_select %p229, %s18, 5
          %s231 = scalar_lea.vmem %s4, %s230
        $region36: #{tpu_custom_call.1} parent=23 // pred_fallthru
          _
      $region24: #{tpu_custom_call.1} parent=5 // pred_fallthru
        _
      %p232 = scmp.le.s32.totalorder 1, %s18
      %p233 = scmp.lt.s32.totalorder %s18, 7
      %p234 = pnand %p232, %p233
      %p235 = pneg %p234
      // Predicated region
      $region37: #{tpu_custom_call.1} parent=5 // pred_check
        _
      $region38: #{tpu_custom_call.1} parent=5 // pred_check_branch
        %237 = sbr.rel (%p234) target = $region40
      $region39: #{tpu_custom_call.1} parent=5 // pred_region
        %s238 = ssub.s32 %s18, 1
        %s239 = sand.u32 %s31, 1
        %s240 = scalar_lea.sflag [#allocation3], %s239
        %s241 = sand.u32 %s31, 1
        %s242 = smul.addr %s241, 16
        %s243 = scalar_lea.vmem [#allocation2], %s242
        // Predicated region
        $region41: #{tpu_custom_call.1} parent=39 // pred_check
          %p244 = pneg %p44
        $region42: #{tpu_custom_call.1} parent=39 // pred_check_branch
          %246 = sbr.rel (%p244) target = $region44
        $region43: #{tpu_custom_call.1} parent=39 // pred_region
          %247 = dma.done %s240, 256
        $region44: #{tpu_custom_call.1} parent=39 // pred_fallthru
          _
        // Predicated region
        $region45: #{tpu_custom_call.1} parent=39 // pred_check
          %p248 = pneg %p86
        $region46: #{tpu_custom_call.1} parent=39 // pred_check_branch
          %250 = sbr.rel (%p248) target = $region48
        $region47: #{tpu_custom_call.1} parent=39 // pred_region
          %251 = dma.done [#allocation6], 768
        $region48: #{tpu_custom_call.1} parent=39 // pred_fallthru
          _
        %s252 = sand.u32 %s31, 1
        %s253 = scalar_lea.sflag [#allocation3], %s252
        %s254 = sand.u32 %s31, 1
        %s255 = smul.addr %s254, 16
        %s256 = scalar_lea.vmem [#allocation2], %s255
        %p257 = pneg %p44
        %p258 = pneg %p41
        %p259 = pneg %p65
        %p260 = pneg %p62
        %p261 = pneg %p86
        %p262 = pneg %p83
        %p263 = scmp.lt.s32.totalorder %s23, 5
        %s264 = scalar_select %p263, %s23, 5
        %s265 = scalar_lea.vmem %s3, %s264
        %p266 = pneg %p112
        %p267 = pneg %p109
        %p268 = scmp.lt.s32.totalorder %s23, 5
        %s269 = scalar_select %p268, %s23, 5
        %s270 = scalar_lea.vmem %s4, %s269
        %p271 = pneg %p138
        %p272 = pneg %p135
        %p273 = pneg %p164
        %p274 = pneg %p161
        %s275 = sand.u32 %s151, 1
        %s276 = scalar_lea.sflag [#allocation4], %s275
        %s277 = sand.u32 %s151, 1
        %s278 = smul.addr %s277, 912
        %s279 = scalar_lea.vmem [#allocation7], %s278
        %p280 = scmp.lt.s32.totalorder %s23, 5
        %s281 = scalar_select %p280, %s23, 5
        %s282 = scalar_lea.vmem %s3, %s281
        %p283 = scmp.lt.s32.totalorder %s23, 5
        %s284 = scalar_select %p283, %s23, 5
        %s285 = scalar_lea.vmem %s4, %s284
        %v286 = vld [vmem:[%s243] sm:$0xff]
        %v287 = vld [vmem:[%s243 + $0x8] sm:$0xff]
        %v288 = vld [vmem:[%s282] sm:$0x1]
        %v290 = vlaneseq
        %v291 = vshrl.u32 %v290, 7
        %v292 = vsub.s32 0, %v291
        %v293 = vrot.slane %v288, %v292
        %294 = vset.pattern.permute.xlu0 0
        %295 = vperm.xlu0 %294, %v293
        %v296 = vpop.permute.xlu0 %295
        %v298 = vmul.f32 %v286, %v296
        %v299 = vmul.f32 %v287, %v296
        %v300 = vld [vmem:[%s285] sm:$0x1]
        %v302 = vlaneseq
        %v303 = vshrl.u32 %v302, 7
        %v304 = vsub.s32 0, %v303
        %v305 = vrot.slane %v300, %v304
        %306 = vset.pattern.permute.xlu0 0
        %307 = vperm.xlu0 %306, %v305
        %v308 = vpop.permute.xlu0 %307
        %v310 = vadd.f32 %v298, %v308
        %v311 = vadd.f32 %v299, %v308
        %v312 = vld [vmem:[%s1] sm:$0xff]
        %v313 = vld [vmem:[%s1 + $0x8] sm:$0xff]
        %v314 = vld [vmem:[%s1 + $0x10] sm:$0xff]
        %v315 = vld [vmem:[%s1 + $0x18] sm:$0xff]
        %v316 = vld [vmem:[%s1 + $0x20] sm:$0xff]
        %v317 = vld [vmem:[%s1 + $0x28] sm:$0xff]
        %v318 = vld [vmem:[%s1 + $0x30] sm:$0xff]
        %v319 = vld [vmem:[%s1 + $0x38] sm:$0xff]
        %v320 = vld [vmem:[%s1 + $0x40] sm:$0xff]
        %v321 = vld [vmem:[%s1 + $0x48] sm:$0xff]
        %v322 = vld [vmem:[%s1 + $0x50] sm:$0xff]
        %v323 = vld [vmem:[%s1 + $0x58] sm:$0xff]
        %v324 = vld [vmem:[%s1 + $0x60] sm:$0xff]
        %v325 = vld [vmem:[%s1 + $0x68] sm:$0xff]
        %v326 = vld [vmem:[%s1 + $0x70] sm:$0xff]
        %v327 = vld [vmem:[%s1 + $0x78] sm:$0xff]
        %v328 = vld [vmem:[%s1 + $0x80] sm:$0xff]
        %v329 = vld [vmem:[%s1 + $0x88] sm:$0xff]
        %v330 = vld [vmem:[%s1 + $0x90] sm:$0xff]
        %v331 = vld [vmem:[%s1 + $0x98] sm:$0xff]
        %v332 = vld [vmem:[%s1 + $0xa0] sm:$0xff]
        %v333 = vld [vmem:[%s1 + $0xa8] sm:$0xff]
        %v334 = vld [vmem:[%s1 + $0xb0] sm:$0xff]
        %v335 = vld [vmem:[%s1 + $0xb8] sm:$0xff]
        %v336 = vld [vmem:[%s1 + $0xc0] sm:$0xff]
        %v337 = vld [vmem:[%s1 + $0xc8] sm:$0xff]
        %v338 = vld [vmem:[%s1 + $0xd0] sm:$0xff]
        %v339 = vld [vmem:[%s1 + $0xd8] sm:$0xff]
        %v340 = vld [vmem:[%s1 + $0xe0] sm:$0xff]
        %v341 = vld [vmem:[%s1 + $0xe8] sm:$0xff]
        %v342 = vld [vmem:[%s1 + $0xf0] sm:$0xff]
        %v343 = vld [vmem:[%s1 + $0xf8] sm:$0xff]
        %v344 = vld [vmem:[%s1 + $0x100] sm:$0xff]
        %v345 = vld [vmem:[%s1 + $0x108] sm:$0xff]
        %v346 = vld [vmem:[%s1 + $0x110] sm:$0xff]
        %v347 = vld [vmem:[%s1 + $0x118] sm:$0xff]
        %v348 = vld [vmem:[%s1 + $0x120] sm:$0xff]
        %v349 = vld [vmem:[%s1 + $0x128] sm:$0x7]
        %vm350 = vcmask 130048
        %v352 = vsel %vm350, %v312, 0
        %v355 = vsel %vm350, %v313, 0
        %v358 = vsel %vm350, %v314, 0
        %v361 = vsel %vm350, %v315, 0
        %v364 = vsel %vm350, %v316, 0
        %v367 = vsel %vm350, %v317, 0
        %v370 = vsel %vm350, %v318, 0
        %v373 = vsel %vm350, %v319, 0
        %v376 = vsel %vm350, %v320, 0
        %v379 = vsel %vm350, %v321, 0
        %v382 = vsel %vm350, %v322, 0
        %v385 = vsel %vm350, %v323, 0
        %v388 = vsel %vm350, %v324, 0
        %v391 = vsel %vm350, %v325, 0
        %v394 = vsel %vm350, %v326, 0
        %v397 = vsel %vm350, %v327, 0
        %v400 = vsel %vm350, %v328, 0
        %v403 = vsel %vm350, %v329, 0
        %v406 = vsel %vm350, %v330, 0
        %v409 = vsel %vm350, %v331, 0
        %v412 = vsel %vm350, %v332, 0
        %v415 = vsel %vm350, %v333, 0
        %v418 = vsel %vm350, %v334, 0
        %v421 = vsel %vm350, %v335, 0
        %v424 = vsel %vm350, %v336, 0
        %v427 = vsel %vm350, %v337, 0
        %v430 = vsel %vm350, %v338, 0
        %v433 = vsel %vm350, %v339, 0
        %v436 = vsel %vm350, %v340, 0
        %v439 = vsel %vm350, %v341, 0
        %v442 = vsel %vm350, %v342, 0
        %v445 = vsel %vm350, %v343, 0
        %v448 = vsel %vm350, %v344, 0
        %v451 = vsel %vm350, %v345, 0
        %v454 = vsel %vm350, %v346, 0
        %v457 = vsel %vm350, %v347, 0
        %v460 = vsel %vm350, %v348, 0
        %v463 = vsel %vm350, %v349, 0
        %465 = vmatprep.subr.mxu0 0.0
        %466 = vmatpush1.msra.mxu0 %v310
        %467 = vmatprep.subr.mxu0 0.0
        %468 = vmatpush1.msra.mxu0 %v311
        %469 = vmatprep.subr.mxu0 0.0
        %470 = vmatpush1.msra.mxu0 0.0
        %471 = vmatprep.subr.mxu0 0.0
        %472 = vmatpush1.msra.mxu0 0.0
        %473 = vmatprep.subr.mxu0 0.0
        %474 = vmatpush1.msra.mxu0 0.0
        %475 = vmatprep.subr.mxu0 0.0
        %476 = vmatpush1.msra.mxu0 0.0
        %477 = vmatprep.subr.mxu0 0.0
        %478 = vmatpush1.msra.mxu0 0.0
        %479 = vmatprep.subr.mxu0 0.0
        %480 = vmatpush1.msra.mxu0 0.0
        %481 = vmatprep.subr.mxu0 0.0
        %482 = vmatpush1.msra.mxu0 0.0
        %483 = vmatprep.subr.mxu0 0.0
        %484 = vmatpush1.msra.mxu0 0.0
        %485 = vmatprep.subr.mxu0 0.0
        %486 = vmatpush1.msra.mxu0 0.0
        %487 = vmatprep.subr.mxu0 0.0
        %488 = vmatpush1.msra.mxu0 0.0
        %489 = vmatprep.subr.mxu0 0.0
        %490 = vmatpush1.msra.mxu0 0.0
        %491 = vmatprep.subr.mxu0 0.0
        %492 = vmatpush1.msra.mxu0 0.0
        %493 = vmatprep.subr.mxu0 0.0
        %494 = vmatpush1.msra.mxu0 0.0
        %495 = vmatprep.subr.mxu0 0.0
        %496 = vmatpush1.msra.mxu0 0.0
        %497 = vmatprep.subr.mxu0 0.0
        %498 = vmatpush1.msra.mxu0 0.0
        %499 = vmatprep.subr.mxu0 0.0
        %500 = vmatpush1.msra.mxu0 0.0
        %501 = vmatprep.subr.mxu0 0.0
        %502 = vmatpush1.msra.mxu0 0.0
        %503 = vmatprep.subr.mxu0 0.0
        %504 = vmatpush1.msra.mxu0 0.0
        %505 = vmatprep.subr.mxu0 0.0
        %506 = vmatpush1.msra.mxu0 0.0
        %507 = vmatprep.subr.mxu0 0.0
        %508 = vmatpush1.msra.mxu0 0.0
        %509 = vmatprep.subr.mxu0 0.0
        %510 = vmatpush1.msra.mxu0 0.0
        %511 = vmatprep.subr.mxu0 0.0
        %512 = vmatpush1.msra.mxu0 0.0
        %513 = vmatprep.subr.mxu0 0.0
        %514 = vmatpush1.msra.mxu0 0.0
        %515 = vmatprep.subr.mxu0 0.0
        %516 = vmatpush1.msra.mxu0 0.0
        %517 = vmatprep.subr.mxu0 0.0
        %518 = vmatpush1.msra.mxu0 0.0
        %519 = vmatprep.subr.mxu0 0.0
        %520 = vmatpush1.msra.mxu0 0.0
        %521 = vmatprep.subr.mxu0 0.0
        %522 = vmatpush1.msra.mxu0 0.0
        %523 = vmatprep.subr.mxu0 0.0
        %524 = vmatpush1.msra.mxu0 0.0
        %525 = vmatprep.subr.mxu0 0.0
        %526 = vmatpush1.msra.mxu0 0.0
        %527 = vmatprep.subr.mxu0 0.0
        %528 = vmatpush1.msra.mxu0 0.0
        %529 = vmatprep.mubr.f32.mxu0 0.0
        %530 = vmatmul.mubr.f32.gmra.mrb[0].mxu0 %v352
        %v531 = vpop.f32.mrb[0].mxu0
        %v532 = vadd.f32 0.0, %v531
        %v533 = vpop.f32.mrb[0].mxu0
        %534 = vmatprep.mubr.f32.mxu0 0.0
        %535 = vmatmul.mubr.f32.gmra.mrb[0].mxu0 %v355
        %v536 = vpop.f32.mrb[0].mxu0
        %v537 = vadd.f32 0.0, %v536
        %v538 = vpop.f32.mrb[0].mxu0
        %539 = vmatprep.mubr.f32.mxu0 0.0
        %540 = vmatmul.mubr.f32.gmra.mrb[0].mxu0 %v358
        %v541 = vpop.f32.mrb[0].mxu0
        %v542 = vadd.f32 0.0, %v541
        %v543 = vpop.f32.mrb[0].mxu0
        %544 = vmatprep.mubr.f32.mxu0 0.0
        %545 = vmatmul.mubr.f32.gmra.mrb[0].mxu0 %v361
        %v546 = vpop.f32.mrb[0].mxu0
        %v547 = vadd.f32 0.0, %v546
        %v548 = vpop.f32.mrb[0].mxu0
        %549 = vmatprep.mubr.f32.mxu0 0.0
        %550 = vmatmul.mubr.f32.gmra.mrb[0].mxu0 %v364
        %v551 = vpop.f32.mrb[0].mxu0
        %v552 = vadd.f32 0.0, %v551
        %v553 = vpop.f32.mrb[0].mxu0
        %554 = vmatprep.mubr.f32.mxu0 0.0
        %555 = vmatmul.mubr.f32.gmra.mrb[0].mxu0 %v367
        %v556 = vpop.f32.mrb[0].mxu0
        %v557 = vadd.f32 0.0, %v556
        %v558 = vpop.f32.mrb[0].mxu0
        %559 = vmatprep.mubr.f32.mxu0 0.0
        %560 = vmatmul.mubr.f32.gmra.mrb[0].mxu0 %v370
        %v561 = vpop.f32.mrb[0].mxu0
        %v562 = vadd.f32 0.0, %v561
        %v563 = vpop.f32.mrb[0].mxu0
        %564 = vmatprep.mubr.f32.mxu0 0.0
        %565 = vmatmul.mubr.f32.gmra.mrb[0].mxu0 %v373
        %v566 = vpop.f32.mrb[0].mxu0
        %v567 = vadd.f32 0.0, %v566
        %v568 = vpop.f32.mrb[0].mxu0
        %569 = vmatprep.mubr.f32.mxu0 0.0
        %570 = vmatmul.mubr.f32.gmra.mrb[0].mxu0 %v376
        %v571 = vpop.f32.mrb[0].mxu0
        %v572 = vadd.f32 0.0, %v571
        %v573 = vpop.f32.mrb[0].mxu0
        %574 = vmatprep.mubr.f32.mxu0 0.0
        %575 = vmatmul.mubr.f32.gmra.mrb[0].mxu0 %v379
        %v576 = vpop.f32.mrb[0].mxu0
        %v577 = vadd.f32 0.0, %v576
        %v578 = vpop.f32.mrb[0].mxu0
        %579 = vmatprep.mubr.f32.mxu0 0.0
        %580 = vmatmul.mubr.f32.gmra.mrb[0].mxu0 %v382
        %v581 = vpop.f32.mrb[0].mxu0
        %v582 = vadd.f32 0.0, %v581
        %v583 = vpop.f32.mrb[0].mxu0
        %584 = vmatprep.mubr.f32.mxu0 0.0
        %585 = vmatmul.mubr.f32.gmra.mrb[0].mxu0 %v385
        %v586 = vpop.f32.mrb[0].mxu0
        %v587 = vadd.f32 0.0, %v586
        %v588 = vpop.f32.mrb[0].mxu0
        %589 = vmatprep.mubr.f32.mxu0 0.0
        %590 = vmatmul.mubr.f32.gmra.mrb[0].mxu0 %v388
        %v591 = vpop.f32.mrb[0].mxu0
        %v592 = vadd.f32 0.0, %v591
        %v593 = vpop.f32.mrb[0].mxu0
        %594 = vmatprep.mubr.f32.mxu0 0.0
        %595 = vmatmul.mubr.f32.gmra.mrb[0].mxu0 %v391
        %v596 = vpop.f32.mrb[0].mxu0
        %v597 = vadd.f32 0.0, %v596
        %v598 = vpop.f32.mrb[0].mxu0
        %599 = vmatprep.mubr.f32.mxu0 0.0
        %600 = vmatmul.mubr.f32.gmra.mrb[0].mxu0 %v394
        %v601 = vpop.f32.mrb[0].mxu0
        %v602 = vadd.f32 0.0, %v601
        %v603 = vpop.f32.mrb[0].mxu0
        %604 = vmatprep.mubr.f32.mxu0 0.0
        %605 = vmatmul.mubr.f32.gmra.mrb[0].mxu0 %v397
        %v606 = vpop.f32.mrb[0].mxu0
        %v607 = vadd.f32 0.0, %v606
        %v608 = vpop.f32.mrb[0].mxu0
        %609 = vmatprep.mubr.f32.mxu0 0.0
        %610 = vmatmul.mubr.f32.gmra.mrb[0].mxu0 %v400
        %v611 = vpop.f32.mrb[0].mxu0
        %v612 = vadd.f32 0.0, %v611
        %v613 = vpop.f32.mrb[0].mxu0
        %614 = vmatprep.mubr.f32.mxu0 0.0
        %615 = vmatmul.mubr.f32.gmra.mrb[0].mxu0 %v403
        %v616 = vpop.f32.mrb[0].mxu0
        %v617 = vadd.f32 0.0, %v616
        %v618 = vpop.f32.mrb[0].mxu0
        %619 = vmatprep.mubr.f32.mxu0 0.0
        %620 = vmatmul.mubr.f32.gmra.mrb[0].mxu0 %v406
        %v621 = vpop.f32.mrb[0].mxu0
        %v622 = vadd.f32 0.0, %v621
        %v623 = vpop.f32.mrb[0].mxu0
        %624 = vmatprep.mubr.f32.mxu0 0.0
        %625 = vmatmul.mubr.f32.gmra.mrb[0].mxu0 %v409
        %v626 = vpop.f32.mrb[0].mxu0
        %v627 = vadd.f32 0.0, %v626
        %v628 = vpop.f32.mrb[0].mxu0
        %629 = vmatprep.mubr.f32.mxu0 0.0
        %630 = vmatmul.mubr.f32.gmra.mrb[0].mxu0 %v412
        %v631 = vpop.f32.mrb[0].mxu0
        %v632 = vadd.f32 0.0, %v631
        %v633 = vpop.f32.mrb[0].mxu0
        %634 = vmatprep.mubr.f32.mxu0 0.0
        %635 = vmatmul.mubr.f32.gmra.mrb[0].mxu0 %v415
        %v636 = vpop.f32.mrb[0].mxu0
        %v637 = vadd.f32 0.0, %v636
        %v638 = vpop.f32.mrb[0].mxu0
        %639 = vmatprep.mubr.f32.mxu0 0.0
        %640 = vmatmul.mubr.f32.gmra.mrb[0].mxu0 %v418
        %v641 = vpop.f32.mrb[0].mxu0
        %v642 = vadd.f32 0.0, %v641
        %v643 = vpop.f32.mrb[0].mxu0
        %644 = vmatprep.mubr.f32.mxu0 0.0
        %645 = vmatmul.mubr.f32.gmra.mrb[0].mxu0 %v421
        %v646 = vpop.f32.mrb[0].mxu0
        %v647 = vadd.f32 0.0, %v646
        %v648 = vpop.f32.mrb[0].mxu0
        %649 = vmatprep.mubr.f32.mxu0 0.0
        %650 = vmatmul.mubr.f32.gmra.mrb[0].mxu0 %v424
        %v651 = vpop.f32.mrb[0].mxu0
        %v652 = vadd.f32 0.0, %v651
        %v653 = vpop.f32.mrb[0].mxu0
        %654 = vmatprep.mubr.f32.mxu0 0.0
        %655 = vmatmul.mubr.f32.gmra.mrb[0].mxu0 %v427
        %v656 = vpop.f32.mrb[0].mxu0
        %v657 = vadd.f32 0.0, %v656
        %v658 = vpop.f32.mrb[0].mxu0
        %659 = vmatprep.mubr.f32.mxu0 0.0
        %660 = vmatmul.mubr.f32.gmra.mrb[0].mxu0 %v430
        %v661 = vpop.f32.mrb[0].mxu0
        %v662 = vadd.f32 0.0, %v661
        %v663 = vpop.f32.mrb[0].mxu0
        %664 = vmatprep.mubr.f32.mxu0 0.0
        %665 = vmatmul.mubr.f32.gmra.mrb[0].mxu0 %v433
        %v666 = vpop.f32.mrb[0].mxu0
        %v667 = vadd.f32 0.0, %v666
        %v668 = vpop.f32.mrb[0].mxu0
        %669 = vmatprep.mubr.f32.mxu0 0.0
        %670 = vmatmul.mubr.f32.gmra.mrb[0].mxu0 %v436
        %v671 = vpop.f32.mrb[0].mxu0
        %v672 = vadd.f32 0.0, %v671
        %v673 = vpop.f32.mrb[0].mxu0
        %674 = vmatprep.mubr.f32.mxu0 0.0
        %675 = vmatmul.mubr.f32.gmra.mrb[0].mxu0 %v439
        %v676 = vpop.f32.mrb[0].mxu0
        %v677 = vadd.f32 0.0, %v676
        %v678 = vpop.f32.mrb[0].mxu0
        %679 = vmatprep.mubr.f32.mxu0 0.0
        %680 = vmatmul.mubr.f32.gmra.mrb[0].mxu0 %v442
        %v681 = vpop.f32.mrb[0].mxu0
        %v682 = vadd.f32 0.0, %v681
        %v683 = vpop.f32.mrb[0].mxu0
        %684 = vmatprep.mubr.f32.mxu0 0.0
        %685 = vmatmul.mubr.f32.gmra.mrb[0].mxu0 %v445
        %v686 = vpop.f32.mrb[0].mxu0
        %v687 = vadd.f32 0.0, %v686
        %v688 = vpop.f32.mrb[0].mxu0
        %689 = vmatprep.mubr.f32.mxu0 0.0
        %690 = vmatmul.mubr.f32.gmra.mrb[0].mxu0 %v448
        %v691 = vpop.f32.mrb[0].mxu0
        %v692 = vadd.f32 0.0, %v691
        %v693 = vpop.f32.mrb[0].mxu0
        %694 = vmatprep.mubr.f32.mxu0 0.0
        %695 = vmatmul.mubr.f32.gmra.mrb[0].mxu0 %v451
        %v696 = vpop.f32.mrb[0].mxu0
        %v697 = vadd.f32 0.0, %v696
        %v698 = vpop.f32.mrb[0].mxu0
        %699 = vmatprep.mubr.f32.mxu0 0.0
        %700 = vmatmul.mubr.f32.gmra.mrb[0].mxu0 %v454
        %v701 = vpop.f32.mrb[0].mxu0
        %v702 = vadd.f32 0.0, %v701
        %v703 = vpop.f32.mrb[0].mxu0
        %704 = vmatprep.mubr.f32.mxu0 0.0
        %705 = vmatmul.mubr.f32.gmra.mrb[0].mxu0 %v457
        %v706 = vpop.f32.mrb[0].mxu0
        %v707 = vadd.f32 0.0, %v706
        %v708 = vpop.f32.mrb[0].mxu0
        %709 = vmatprep.mubr.f32.mxu0 0.0
        %710 = vmatmul.mubr.f32.gmra.mrb[0].mxu0 %v460
        %v711 = vpop.f32.mrb[0].mxu0
        %v712 = vadd.f32 0.0, %v711
        %v713 = vpop.f32.mrb[0].mxu0
        %714 = vmatprep.mubr.f32.mxu0 0.0
        %715 = vmatmul.mubr.f32.gmra.mrb[0].mxu0 %v463
        %v716 = vpop.f32.mrb[0].mxu0
        %v717 = vadd.f32 0.0, %v716
        %v718 = vpop.f32.mrb[0].mxu0
        %719 = vdwg.mxu0
        %v720 = vld [vmem:[#allocation5] sm:$0xff]
        %v721 = vld [vmem:[#allocation5 + $0x8] sm:$0xff]
        %v722 = vld [vmem:[#allocation5 + $0x10] sm:$0xff]
        %v723 = vld [vmem:[#allocation5 + $0x18] sm:$0xff]
        %v724 = vld [vmem:[#allocation5 + $0x20] sm:$0xff]
        %v725 = vld [vmem:[#allocation5 + $0x28] sm:$0xff]
        %v727 = vsel %vm350, %v532, 0
        %v730 = vsel %vm350, %v537, 0
        %v733 = vsel %vm350, %v542, 0
        %v736 = vsel %vm350, %v547, 0
        %v739 = vsel %vm350, %v552, 0
        %v742 = vsel %vm350, %v557, 0
        %v745 = vsel %vm350, %v562, 0
        %v748 = vsel %vm350, %v567, 0
        %v751 = vsel %vm350, %v572, 0
        %v754 = vsel %vm350, %v577, 0
        %v757 = vsel %vm350, %v582, 0
        %v760 = vsel %vm350, %v587, 0
        %v763 = vsel %vm350, %v592, 0
        %v766 = vsel %vm350, %v597, 0
        %v769 = vsel %vm350, %v602, 0
        %v772 = vsel %vm350, %v607, 0
        %v775 = vsel %vm350, %v612, 0
        %v778 = vsel %vm350, %v617, 0
        %v781 = vsel %vm350, %v622, 0
        %v784 = vsel %vm350, %v627, 0
        %v787 = vsel %vm350, %v632, 0
        %v790 = vsel %vm350, %v637, 0
        %v793 = vsel %vm350, %v642, 0
        %v796 = vsel %vm350, %v647, 0
        %v799 = vsel %vm350, %v652, 0
        %v802 = vsel %vm350, %v657, 0
        %v805 = vsel %vm350, %v662, 0
        %v808 = vsel %vm350, %v667, 0
        %v811 = vsel %vm350, %v672, 0
        %v814 = vsel %vm350, %v677, 0
        %v817 = vsel %vm350, %v682, 0
        %v820 = vsel %vm350, %v687, 0
        %v823 = vsel %vm350, %v692, 0
        %v826 = vsel %vm350, %v697, 0
        %v829 = vsel %vm350, %v702, 0
        %v832 = vsel %vm350, %v707, 0
        %v835 = vsel %vm350, %v712, 0
        %v838 = vsel %vm350, %v717, 0
        %840 = vmatprep.subr.mxu0 %v721
        %841 = vmatpush1.msra.mxu0 %v720
        %842 = vmatprep.subr.mxu0 %v724
        %843 = vmatpush1.msra.mxu0 %v723
        %844 = vmatprep.subr.mxu0 0.0
        %845 = vmatpush1.msra.mxu0 0.0
        %846 = vmatprep.subr.mxu0 0.0
        %847 = vmatpush1.msra.mxu0 0.0
        %848 = vmatprep.subr.mxu0 0.0
        %849 = vmatpush1.msra.mxu0 0.0
        %850 = vmatprep.subr.mxu0 0.0
        %851 = vmatpush1.msra.mxu0 0.0
        %852 = vmatprep.subr.mxu0 0.0
        %853 = vmatpush1.msra.mxu0 0.0
        %854 = vmatprep.subr.mxu0 0.0
        %855 = vmatpush1.msra.mxu0 0.0
        %856 = vmatprep.subr.mxu0 0.0
        %857 = vmatpush1.msra.mxu0 0.0
        %858 = vmatprep.subr.mxu0 0.0
        %859 = vmatpush1.msra.mxu0 0.0
        %860 = vmatprep.subr.mxu0 0.0
        %861 = vmatpush1.msra.mxu0 0.0
        %862 = vmatprep.subr.mxu0 0.0
        %863 = vmatpush1.msra.mxu0 0.0
        %864 = vmatprep.subr.mxu0 0.0
        %865 = vmatpush1.msra.mxu0 0.0
        %866 = vmatprep.subr.mxu0 0.0
        %867 = vmatpush1.msra.mxu0 0.0
        %868 = vmatprep.subr.mxu0 0.0
        %869 = vmatpush1.msra.mxu0 0.0
        %870 = vmatprep.subr.mxu0 0.0
        %871 = vmatpush1.msra.mxu0 0.0
        %872 = vmatprep.subr.mxu0 0.0
        %873 = vmatpush1.msra.mxu0 0.0
        %874 = vmatprep.subr.mxu0 0.0
        %875 = vmatpush1.msra.mxu0 0.0
        %876 = vmatprep.subr.mxu0 0.0
        %877 = vmatpush1.msra.mxu0 0.0
        %878 = vmatprep.subr.mxu0 0.0
        %879 = vmatpush1.msra.mxu0 0.0
        %880 = vmatprep.subr.mxu0 0.0
        %881 = vmatpush1.msra.mxu0 0.0
        %882 = vmatprep.subr.mxu0 0.0
        %883 = vmatpush1.msra.mxu0 0.0
        %884 = vmatprep.subr.mxu0 0.0
        %885 = vmatpush1.msra.mxu0 0.0
        %886 = vmatprep.subr.mxu0 0.0
        %887 = vmatpush1.msra.mxu0 0.0
        %888 = vmatprep.subr.mxu0 0.0
        %889 = vmatpush1.msra.mxu0 0.0
        %890 = vmatprep.subr.mxu0 0.0
        %891 = vmatpush1.msra.mxu0 0.0
        %892 = vmatprep.subr.mxu0 0.0
        %893 = vmatpush1.msra.mxu0 0.0
        %894 = vmatprep.subr.mxu0 0.0
        %895 = vmatpush1.msra.mxu0 0.0
        %896 = vmatprep.subr.mxu0 0.0
        %897 = vmatpush1.msra.mxu0 0.0
        %898 = vmatprep.subr.mxu0 0.0
        %899 = vmatpush1.msra.mxu0 0.0
        %900 = vmatprep.subr.mxu0 0.0
        %901 = vmatpush1.msra.mxu0 0.0
        %902 = vmatprep.subr.mxu0 0.0
        %903 = vmatpush1.msra.mxu0 0.0
        %904 = vmatprep.mubr.f32.mxu0 0.0
        %905 = vmatmul.mubr.f32.gmra.mrb[0].mxu0 %v727
        %v906 = vpop.f32.mrb[0].mxu0
        %v907 = vadd.f32 0.0, %v906
        %v908 = vpop.f32.mrb[0].mxu0
        %v909 = vadd.f32 0.0, %v908
        %910 = vmatprep.mubr.f32.mxu0 0.0
        %911 = vmatmul.mubr.f32.gmra.mrb[0].mxu0 %v730
        %v912 = vpop.f32.mrb[0].mxu0
        %v913 = vadd.f32 0.0, %v912
        %v914 = vpop.f32.mrb[0].mxu0
        %v915 = vadd.f32 0.0, %v914
        %916 = vmatprep.mubr.f32.mxu0 0.0
        %917 = vmatmul.mubr.f32.gmra.mrb[0].mxu0 %v733
        %v918 = vpop.f32.mrb[0].mxu0
        %v919 = vadd.f32 0.0, %v918
        %v920 = vpop.f32.mrb[0].mxu0
        %v921 = vadd.f32 0.0, %v920
        %922 = vmatprep.mubr.f32.mxu0 0.0
        %923 = vmatmul.mubr.f32.gmra.mrb[0].mxu0 %v736
        %v924 = vpop.f32.mrb[0].mxu0
        %v925 = vadd.f32 0.0, %v924
        %v926 = vpop.f32.mrb[0].mxu0
        %v927 = vadd.f32 0.0, %v926
        %928 = vmatprep.mubr.f32.mxu0 0.0
        %929 = vmatmul.mubr.f32.gmra.mrb[0].mxu0 %v739
        %v930 = vpop.f32.mrb[0].mxu0
        %v931 = vadd.f32 0.0, %v930
        %v932 = vpop.f32.mrb[0].mxu0
        %v933 = vadd.f32 0.0, %v932
        %934 = vmatprep.mubr.f32.mxu0 0.0
        %935 = vmatmul.mubr.f32.gmra.mrb[0].mxu0 %v742
        %v936 = vpop.f32.mrb[0].mxu0
        %v937 = vadd.f32 0.0, %v936
        %v938 = vpop.f32.mrb[0].mxu0
        %v939 = vadd.f32 0.0, %v938
        %940 = vmatprep.mubr.f32.mxu0 0.0
        %941 = vmatmul.mubr.f32.gmra.mrb[0].mxu0 %v745
        %v942 = vpop.f32.mrb[0].mxu0
        %v943 = vadd.f32 0.0, %v942
        %v944 = vpop.f32.mrb[0].mxu0
        %v945 = vadd.f32 0.0, %v944
        %946 = vmatprep.mubr.f32.mxu0 0.0
        %947 = vmatmul.mubr.f32.gmra.mrb[0].mxu0 %v748
        %v948 = vpop.f32.mrb[0].mxu0
        %v949 = vadd.f32 0.0, %v948
        %v950 = vpop.f32.mrb[0].mxu0
        %v951 = vadd.f32 0.0, %v950
        %952 = vmatprep.mubr.f32.mxu0 0.0
        %953 = vmatmul.mubr.f32.gmra.mrb[0].mxu0 %v751
        %v954 = vpop.f32.mrb[0].mxu0
        %v955 = vadd.f32 0.0, %v954
        %v956 = vpop.f32.mrb[0].mxu0
        %v957 = vadd.f32 0.0, %v956
        %958 = vmatprep.mubr.f32.mxu0 0.0
        %959 = vmatmul.mubr.f32.gmra.mrb[0].mxu0 %v754
        %v960 = vpop.f32.mrb[0].mxu0
        %v961 = vadd.f32 0.0, %v960
        %v962 = vpop.f32.mrb[0].mxu0
        %v963 = vadd.f32 0.0, %v962
        %964 = vmatprep.mubr.f32.mxu0 0.0
        %965 = vmatmul.mubr.f32.gmra.mrb[0].mxu0 %v757
        %v966 = vpop.f32.mrb[0].mxu0
        %v967 = vadd.f32 0.0, %v966
        %v968 = vpop.f32.mrb[0].mxu0
        %v969 = vadd.f32 0.0, %v968
        %970 = vmatprep.mubr.f32.mxu0 0.0
        %971 = vmatmul.mubr.f32.gmra.mrb[0].mxu0 %v760
        %v972 = vpop.f32.mrb[0].mxu0
        %v973 = vadd.f32 0.0, %v972
        %v974 = vpop.f32.mrb[0].mxu0
        %v975 = vadd.f32 0.0, %v974
        %976 = vmatprep.mubr.f32.mxu0 0.0
        %977 = vmatmul.mubr.f32.gmra.mrb[0].mxu0 %v763
        %v978 = vpop.f32.mrb[0].mxu0
        %v979 = vadd.f32 0.0, %v978
        %v980 = vpop.f32.mrb[0].mxu0
        %v981 = vadd.f32 0.0, %v980
        %982 = vmatprep.mubr.f32.mxu0 0.0
        %983 = vmatmul.mubr.f32.gmra.mrb[0].mxu0 %v766
        %v984 = vpop.f32.mrb[0].mxu0
        %v985 = vadd.f32 0.0, %v984
        %v986 = vpop.f32.mrb[0].mxu0
        %v987 = vadd.f32 0.0, %v986
        %988 = vmatprep.mubr.f32.mxu0 0.0
        %989 = vmatmul.mubr.f32.gmra.mrb[0].mxu0 %v769
        %v990 = vpop.f32.mrb[0].mxu0
        %v991 = vadd.f32 0.0, %v990
        %v992 = vpop.f32.mrb[0].mxu0
        %v993 = vadd.f32 0.0, %v992
        %994 = vmatprep.mubr.f32.mxu0 0.0
        %995 = vmatmul.mubr.f32.gmra.mrb[0].mxu0 %v772
        %v996 = vpop.f32.mrb[0].mxu0
        %v997 = vadd.f32 0.0, %v996
        %v998 = vpop.f32.mrb[0].mxu0
        %v999 = vadd.f32 0.0, %v998
        %1000 = vmatprep.mubr.f32.mxu0 0.0
        %1001 = vmatmul.mubr.f32.gmra.mrb[0].mxu0 %v775
        %v1002 = vpop.f32.mrb[0].mxu0
        %v1003 = vadd.f32 0.0, %v1002
        %v1004 = vpop.f32.mrb[0].mxu0
        %v1005 = vadd.f32 0.0, %v1004
        %1006 = vmatprep.mubr.f32.mxu0 0.0
        %1007 = vmatmul.mubr.f32.gmra.mrb[0].mxu0 %v778
        %v1008 = vpop.f32.mrb[0].mxu0
        %v1009 = vadd.f32 0.0, %v1008
        %v1010 = vpop.f32.mrb[0].mxu0
        %v1011 = vadd.f32 0.0, %v1010
        %1012 = vmatprep.mubr.f32.mxu0 0.0
        %1013 = vmatmul.mubr.f32.gmra.mrb[0].mxu0 %v781
        %v1014 = vpop.f32.mrb[0].mxu0
        %v1015 = vadd.f32 0.0, %v1014
        %v1016 = vpop.f32.mrb[0].mxu0
        %v1017 = vadd.f32 0.0, %v1016
        %1018 = vmatprep.mubr.f32.mxu0 0.0
        %1019 = vmatmul.mubr.f32.gmra.mrb[0].mxu0 %v784
        %v1020 = vpop.f32.mrb[0].mxu0
        %v1021 = vadd.f32 0.0, %v1020
        %v1022 = vpop.f32.mrb[0].mxu0
        %v1023 = vadd.f32 0.0, %v1022
        %1024 = vmatprep.mubr.f32.mxu0 0.0
        %1025 = vmatmul.mubr.f32.gmra.mrb[0].mxu0 %v787
        %v1026 = vpop.f32.mrb[0].mxu0
        %v1027 = vadd.f32 0.0, %v1026
        %v1028 = vpop.f32.mrb[0].mxu0
        %v1029 = vadd.f32 0.0, %v1028
        %1030 = vmatprep.mubr.f32.mxu0 0.0
        %1031 = vmatmul.mubr.f32.gmra.mrb[0].mxu0 %v790
        %v1032 = vpop.f32.mrb[0].mxu0
        %v1033 = vadd.f32 0.0, %v1032
        %v1034 = vpop.f32.mrb[0].mxu0
        %v1035 = vadd.f32 0.0, %v1034
        %1036 = vmatprep.mubr.f32.mxu0 0.0
        %1037 = vmatmul.mubr.f32.gmra.mrb[0].mxu0 %v793
        %v1038 = vpop.f32.mrb[0].mxu0
        %v1039 = vadd.f32 0.0, %v1038
        %v1040 = vpop.f32.mrb[0].mxu0
        %v1041 = vadd.f32 0.0, %v1040
        %1042 = vmatprep.mubr.f32.mxu0 0.0
        %1043 = vmatmul.mubr.f32.gmra.mrb[0].mxu0 %v796
        %v1044 = vpop.f32.mrb[0].mxu0
        %v1045 = vadd.f32 0.0, %v1044
        %v1046 = vpop.f32.mrb[0].mxu0
        %v1047 = vadd.f32 0.0, %v1046
        %1048 = vmatprep.mubr.f32.mxu0 0.0
        %1049 = vmatmul.mubr.f32.gmra.mrb[0].mxu0 %v799
        %v1050 = vpop.f32.mrb[0].mxu0
        %v1051 = vadd.f32 0.0, %v1050
        %v1052 = vpop.f32.mrb[0].mxu0
        %v1053 = vadd.f32 0.0, %v1052
        %1054 = vmatprep.mubr.f32.mxu0 0.0
        %1055 = vmatmul.mubr.f32.gmra.mrb[0].mxu0 %v802
        %v1056 = vpop.f32.mrb[0].mxu0
        %v1057 = vadd.f32 0.0, %v1056
        %v1058 = vpop.f32.mrb[0].mxu0
        %v1059 = vadd.f32 0.0, %v1058
        %1060 = vmatprep.mubr.f32.mxu0 0.0
        %1061 = vmatmul.mubr.f32.gmra.mrb[0].mxu0 %v805
        %v1062 = vpop.f32.mrb[0].mxu0
        %v1063 = vadd.f32 0.0, %v1062
        %v1064 = vpop.f32.mrb[0].mxu0
        %v1065 = vadd.f32 0.0, %v1064
        %1066 = vmatprep.mubr.f32.mxu0 0.0
        %1067 = vmatmul.mubr.f32.gmra.mrb[0].mxu0 %v808
        %v1068 = vpop.f32.mrb[0].mxu0
        %v1069 = vadd.f32 0.0, %v1068
        %v1070 = vpop.f32.mrb[0].mxu0
        %v1071 = vadd.f32 0.0, %v1070
        %1072 = vmatprep.mubr.f32.mxu0 0.0
        %1073 = vmatmul.mubr.f32.gmra.mrb[0].mxu0 %v811
        %v1074 = vpop.f32.mrb[0].mxu0
        %v1075 = vadd.f32 0.0, %v1074
        %v1076 = vpop.f32.mrb[0].mxu0
        %v1077 = vadd.f32 0.0, %v1076
        %1078 = vmatprep.mubr.f32.mxu0 0.0
        %1079 = vmatmul.mubr.f32.gmra.mrb[0].mxu0 %v814
        %v1080 = vpop.f32.mrb[0].mxu0
        %v1081 = vadd.f32 0.0, %v1080
        %v1082 = vpop.f32.mrb[0].mxu0
        %v1083 = vadd.f32 0.0, %v1082
        %1084 = vmatprep.mubr.f32.mxu0 0.0
        %1085 = vmatmul.mubr.f32.gmra.mrb[0].mxu0 %v817
        %v1086 = vpop.f32.mrb[0].mxu0
        %v1087 = vadd.f32 0.0, %v1086
        %v1088 = vpop.f32.mrb[0].mxu0
        %v1089 = vadd.f32 0.0, %v1088
        %1090 = vmatprep.mubr.f32.mxu0 0.0
        %1091 = vmatmul.mubr.f32.gmra.mrb[0].mxu0 %v820
        %v1092 = vpop.f32.mrb[0].mxu0
        %v1093 = vadd.f32 0.0, %v1092
        %v1094 = vpop.f32.mrb[0].mxu0
        %v1095 = vadd.f32 0.0, %v1094
        %1096 = vmatprep.mubr.f32.mxu0 0.0
        %1097 = vmatmul.mubr.f32.gmra.mrb[0].mxu0 %v823
        %v1098 = vpop.f32.mrb[0].mxu0
        %v1099 = vadd.f32 0.0, %v1098
        %v1100 = vpop.f32.mrb[0].mxu0
        %v1101 = vadd.f32 0.0, %v1100
        %1102 = vmatprep.mubr.f32.mxu0 0.0
        %1103 = vmatmul.mubr.f32.gmra.mrb[0].mxu0 %v826
        %v1104 = vpop.f32.mrb[0].mxu0
        %v1105 = vadd.f32 0.0, %v1104
        %v1106 = vpop.f32.mrb[0].mxu0
        %v1107 = vadd.f32 0.0, %v1106
        %1108 = vmatprep.mubr.f32.mxu0 0.0
        %1109 = vmatmul.mubr.f32.gmra.mrb[0].mxu0 %v829
        %v1110 = vpop.f32.mrb[0].mxu0
        %v1111 = vadd.f32 0.0, %v1110
        %v1112 = vpop.f32.mrb[0].mxu0
        %v1113 = vadd.f32 0.0, %v1112
        %1114 = vmatprep.mubr.f32.mxu0 0.0
        %1115 = vmatmul.mubr.f32.gmra.mrb[0].mxu0 %v832
        %v1116 = vpop.f32.mrb[0].mxu0
        %v1117 = vadd.f32 0.0, %v1116
        %v1118 = vpop.f32.mrb[0].mxu0
        %v1119 = vadd.f32 0.0, %v1118
        %1120 = vmatprep.mubr.f32.mxu0 0.0
        %1121 = vmatmul.mubr.f32.gmra.mrb[0].mxu0 %v835
        %v1122 = vpop.f32.mrb[0].mxu0
        %v1123 = vadd.f32 0.0, %v1122
        %v1124 = vpop.f32.mrb[0].mxu0
        %v1125 = vadd.f32 0.0, %v1124
        %1126 = vmatprep.mubr.f32.mxu0 0.0
        %1127 = vmatmul.mubr.f32.gmra.mrb[0].mxu0 %v838
        %v1128 = vpop.f32.mrb[0].mxu0
        %v1129 = vadd.f32 0.0, %v1128
        %v1130 = vpop.f32.mrb[0].mxu0
        %v1131 = vadd.f32 0.0, %v1130
        %1132 = vdwg.mxu0
        %1133 = vmatprep.subr.mxu0 0.0
        %1134 = vmatpush1.msra.mxu0 %v722
        %1135 = vmatprep.subr.mxu0 0.0
        %1136 = vmatpush1.msra.mxu0 %v725
        %1137 = vmatprep.subr.mxu0 0.0
        %1138 = vmatpush1.msra.mxu0 0.0
        %1139 = vmatprep.subr.mxu0 0.0
        %1140 = vmatpush1.msra.mxu0 0.0
        %1141 = vmatprep.subr.mxu0 0.0
        %1142 = vmatpush1.msra.mxu0 0.0
        %1143 = vmatprep.subr.mxu0 0.0
        %1144 = vmatpush1.msra.mxu0 0.0
        %1145 = vmatprep.subr.mxu0 0.0
        %1146 = vmatpush1.msra.mxu0 0.0
        %1147 = vmatprep.subr.mxu0 0.0
        %1148 = vmatpush1.msra.mxu0 0.0
        %1149 = vmatprep.subr.mxu0 0.0
        %1150 = vmatpush1.msra.mxu0 0.0
        %1151 = vmatprep.subr.mxu0 0.0
        %1152 = vmatpush1.msra.mxu0 0.0
        %1153 = vmatprep.subr.mxu0 0.0
        %1154 = vmatpush1.msra.mxu0 0.0
        %1155 = vmatprep.subr.mxu0 0.0
        %1156 = vmatpush1.msra.mxu0 0.0
        %1157 = vmatprep.subr.mxu0 0.0
        %1158 = vmatpush1.msra.mxu0 0.0
        %1159 = vmatprep.subr.mxu0 0.0
        %1160 = vmatpush1.msra.mxu0 0.0
        %1161 = vmatprep.subr.mxu0 0.0
        %1162 = vmatpush1.msra.mxu0 0.0
        %1163 = vmatprep.subr.mxu0 0.0
        %1164 = vmatpush1.msra.mxu0 0.0
        %1165 = vmatprep.subr.mxu0 0.0
        %1166 = vmatpush1.msra.mxu0 0.0
        %1167 = vmatprep.subr.mxu0 0.0
        %1168 = vmatpush1.msra.mxu0 0.0
        %1169 = vmatprep.subr.mxu0 0.0
        %1170 = vmatpush1.msra.mxu0 0.0
        %1171 = vmatprep.subr.mxu0 0.0
        %1172 = vmatpush1.msra.mxu0 0.0
        %1173 = vmatprep.subr.mxu0 0.0
        %1174 = vmatpush1.msra.mxu0 0.0
        %1175 = vmatprep.subr.mxu0 0.0
        %1176 = vmatpush1.msra.mxu0 0.0
        %1177 = vmatprep.subr.mxu0 0.0
        %1178 = vmatpush1.msra.mxu0 0.0
        %1179 = vmatprep.subr.mxu0 0.0
        %1180 = vmatpush1.msra.mxu0 0.0
        %1181 = vmatprep.subr.mxu0 0.0
        %1182 = vmatpush1.msra.mxu0 0.0
        %1183 = vmatprep.subr.mxu0 0.0
        %1184 = vmatpush1.msra.mxu0 0.0
        %1185 = vmatprep.subr.mxu0 0.0
        %1186 = vmatpush1.msra.mxu0 0.0
        %1187 = vmatprep.subr.mxu0 0.0
        %1188 = vmatpush1.msra.mxu0 0.0
        %1189 = vmatprep.subr.mxu0 0.0
        %1190 = vmatpush1.msra.mxu0 0.0
        %1191 = vmatprep.subr.mxu0 0.0
        %1192 = vmatpush1.msra.mxu0 0.0
        %1193 = vmatprep.subr.mxu0 0.0
        %1194 = vmatpush1.msra.mxu0 0.0
        %1195 = vmatprep.subr.mxu0 0.0
        %1196 = vmatpush1.msra.mxu0 0.0
        %1197 = vmatprep.mubr.f32.mxu0 0.0
        %1198 = vmatmul.mubr.f32.gmra.mrb[0].mxu0 %v727
        %v1199 = vpop.f32.mrb[0].mxu0
        %v1200 = vadd.f32 0.0, %v1199
        %v1201 = vpop.f32.mrb[0].mxu0
        %1202 = vmatprep.mubr.f32.mxu0 0.0
        %1203 = vmatmul.mubr.f32.gmra.mrb[0].mxu0 %v730
        %v1204 = vpop.f32.mrb[0].mxu0
        %v1205 = vadd.f32 0.0, %v1204
        %v1206 = vpop.f32.mrb[0].mxu0
        %1207 = vmatprep.mubr.f32.mxu0 0.0
        %1208 = vmatmul.mubr.f32.gmra.mrb[0].mxu0 %v733
        %v1209 = vpop.f32.mrb[0].mxu0
        %v1210 = vadd.f32 0.0, %v1209
        %v1211 = vpop.f32.mrb[0].mxu0
        %1212 = vmatprep.mubr.f32.mxu0 0.0
        %1213 = vmatmul.mubr.f32.gmra.mrb[0].mxu0 %v736
        %v1214 = vpop.f32.mrb[0].mxu0
        %v1215 = vadd.f32 0.0, %v1214
        %v1216 = vpop.f32.mrb[0].mxu0
        %1217 = vmatprep.mubr.f32.mxu0 0.0
        %1218 = vmatmul.mubr.f32.gmra.mrb[0].mxu0 %v739
        %v1219 = vpop.f32.mrb[0].mxu0
        %v1220 = vadd.f32 0.0, %v1219
        %v1221 = vpop.f32.mrb[0].mxu0
        %1222 = vmatprep.mubr.f32.mxu0 0.0
        %1223 = vmatmul.mubr.f32.gmra.mrb[0].mxu0 %v742
        %v1224 = vpop.f32.mrb[0].mxu0
        %v1225 = vadd.f32 0.0, %v1224
        %v1226 = vpop.f32.mrb[0].mxu0
        %1227 = vmatprep.mubr.f32.mxu0 0.0
        %1228 = vmatmul.mubr.f32.gmra.mrb[0].mxu0 %v745
        %v1229 = vpop.f32.mrb[0].mxu0
        %v1230 = vadd.f32 0.0, %v1229
        %v1231 = vpop.f32.mrb[0].mxu0
        %1232 = vmatprep.mubr.f32.mxu0 0.0
        %1233 = vmatmul.mubr.f32.gmra.mrb[0].mxu0 %v748
        %v1234 = vpop.f32.mrb[0].mxu0
        %v1235 = vadd.f32 0.0, %v1234
        %v1236 = vpop.f32.mrb[0].mxu0
        %1237 = vmatprep.mubr.f32.mxu0 0.0
        %1238 = vmatmul.mubr.f32.gmra.mrb[0].mxu0 %v751
        %v1239 = vpop.f32.mrb[0].mxu0
        %v1240 = vadd.f32 0.0, %v1239
        %v1241 = vpop.f32.mrb[0].mxu0
        %1242 = vmatprep.mubr.f32.mxu0 0.0
        %1243 = vmatmul.mubr.f32.gmra.mrb[0].mxu0 %v754
        %v1244 = vpop.f32.mrb[0].mxu0
        %v1245 = vadd.f32 0.0, %v1244
        %v1246 = vpop.f32.mrb[0].mxu0
        %1247 = vmatprep.mubr.f32.mxu0 0.0
        %1248 = vmatmul.mubr.f32.gmra.mrb[0].mxu0 %v757
        %v1249 = vpop.f32.mrb[0].mxu0
        %v1250 = vadd.f32 0.0, %v1249
        %v1251 = vpop.f32.mrb[0].mxu0
        %1252 = vmatprep.mubr.f32.mxu0 0.0
        %1253 = vmatmul.mubr.f32.gmra.mrb[0].mxu0 %v760
        %v1254 = vpop.f32.mrb[0].mxu0
        %v1255 = vadd.f32 0.0, %v1254
        %v1256 = vpop.f32.mrb[0].mxu0
        %1257 = vmatprep.mubr.f32.mxu0 0.0
        %1258 = vmatmul.mubr.f32.gmra.mrb[0].mxu0 %v763
        %v1259 = vpop.f32.mrb[0].mxu0
        %v1260 = vadd.f32 0.0, %v1259
        %v1261 = vpop.f32.mrb[0].mxu0
        %1262 = vmatprep.mubr.f32.mxu0 0.0
        %1263 = vmatmul.mubr.f32.gmra.mrb[0].mxu0 %v766
        %v1264 = vpop.f32.mrb[0].mxu0
        %v1265 = vadd.f32 0.0, %v1264
        %v1266 = vpop.f32.mrb[0].mxu0
        %1267 = vmatprep.mubr.f32.mxu0 0.0
        %1268 = vmatmul.mubr.f32.gmra.mrb[0].mxu0 %v769
        %v1269 = vpop.f32.mrb[0].mxu0
        %v1270 = vadd.f32 0.0, %v1269
        %v1271 = vpop.f32.mrb[0].mxu0
        %1272 = vmatprep.mubr.f32.mxu0 0.0
        %1273 = vmatmul.mubr.f32.gmra.mrb[0].mxu0 %v772
        %v1274 = vpop.f32.mrb[0].mxu0
        %v1275 = vadd.f32 0.0, %v1274
        %v1276 = vpop.f32.mrb[0].mxu0
        %1277 = vmatprep.mubr.f32.mxu0 0.0
        %1278 = vmatmul.mubr.f32.gmra.mrb[0].mxu0 %v775
        %v1279 = vpop.f32.mrb[0].mxu0
        %v1280 = vadd.f32 0.0, %v1279
        %v1281 = vpop.f32.mrb[0].mxu0
        %1282 = vmatprep.mubr.f32.mxu0 0.0
        %1283 = vmatmul.mubr.f32.gmra.mrb[0].mxu0 %v778
        %v1284 = vpop.f32.mrb[0].mxu0
        %v1285 = vadd.f32 0.0, %v1284
        %v1286 = vpop.f32.mrb[0].mxu0
        %1287 = vmatprep.mubr.f32.mxu0 0.0
        %1288 = vmatmul.mubr.f32.gmra.mrb[0].mxu0 %v781
        %v1289 = vpop.f32.mrb[0].mxu0
        %v1290 = vadd.f32 0.0, %v1289
        %v1291 = vpop.f32.mrb[0].mxu0
        %1292 = vmatprep.mubr.f32.mxu0 0.0
        %1293 = vmatmul.mubr.f32.gmra.mrb[0].mxu0 %v784
        %v1294 = vpop.f32.mrb[0].mxu0
        %v1295 = vadd.f32 0.0, %v1294
        %v1296 = vpop.f32.mrb[0].mxu0
        %1297 = vmatprep.mubr.f32.mxu0 0.0
        %1298 = vmatmul.mubr.f32.gmra.mrb[0].mxu0 %v787
        %v1299 = vpop.f32.mrb[0].mxu0
        %v1300 = vadd.f32 0.0, %v1299
        %v1301 = vpop.f32.mrb[0].mxu0
        %1302 = vmatprep.mubr.f32.mxu0 0.0
        %1303 = vmatmul.mubr.f32.gmra.mrb[0].mxu0 %v790
        %v1304 = vpop.f32.mrb[0].mxu0
        %v1305 = vadd.f32 0.0, %v1304
        %v1306 = vpop.f32.mrb[0].mxu0
        %1307 = vmatprep.mubr.f32.mxu0 0.0
        %1308 = vmatmul.mubr.f32.gmra.mrb[0].mxu0 %v793
        %v1309 = vpop.f32.mrb[0].mxu0
        %v1310 = vadd.f32 0.0, %v1309
        %v1311 = vpop.f32.mrb[0].mxu0
        %1312 = vmatprep.mubr.f32.mxu0 0.0
        %1313 = vmatmul.mubr.f32.gmra.mrb[0].mxu0 %v796
        %v1314 = vpop.f32.mrb[0].mxu0
        %v1315 = vadd.f32 0.0, %v1314
        %v1316 = vpop.f32.mrb[0].mxu0
        %1317 = vmatprep.mubr.f32.mxu0 0.0
        %1318 = vmatmul.mubr.f32.gmra.mrb[0].mxu0 %v799
        %v1319 = vpop.f32.mrb[0].mxu0
        %v1320 = vadd.f32 0.0, %v1319
        %v1321 = vpop.f32.mrb[0].mxu0
        %1322 = vmatprep.mubr.f32.mxu0 0.0
        %1323 = vmatmul.mubr.f32.gmra.mrb[0].mxu0 %v802
        %v1324 = vpop.f32.mrb[0].mxu0
        %v1325 = vadd.f32 0.0, %v1324
        %v1326 = vpop.f32.mrb[0].mxu0
        %1327 = vmatprep.mubr.f32.mxu0 0.0
        %1328 = vmatmul.mubr.f32.gmra.mrb[0].mxu0 %v805
        %v1329 = vpop.f32.mrb[0].mxu0
        %v1330 = vadd.f32 0.0, %v1329
        %v1331 = vpop.f32.mrb[0].mxu0
        %1332 = vmatprep.mubr.f32.mxu0 0.0
        %1333 = vmatmul.mubr.f32.gmra.mrb[0].mxu0 %v808
        %v1334 = vpop.f32.mrb[0].mxu0
        %v1335 = vadd.f32 0.0, %v1334
        %v1336 = vpop.f32.mrb[0].mxu0
        %1337 = vmatprep.mubr.f32.mxu0 0.0
        %1338 = vmatmul.mubr.f32.gmra.mrb[0].mxu0 %v811
        %v1339 = vpop.f32.mrb[0].mxu0
        %v1340 = vadd.f32 0.0, %v1339
        %v1341 = vpop.f32.mrb[0].mxu0
        %1342 = vmatprep.mubr.f32.mxu0 0.0
        %1343 = vmatmul.mubr.f32.gmra.mrb[0].mxu0 %v814
        %v1344 = vpop.f32.mrb[0].mxu0
        %v1345 = vadd.f32 0.0, %v1344
        %v1346 = vpop.f32.mrb[0].mxu0
        %1347 = vmatprep.mubr.f32.mxu0 0.0
        %1348 = vmatmul.mubr.f32.gmra.mrb[0].mxu0 %v817
        %v1349 = vpop.f32.mrb[0].mxu0
        %v1350 = vadd.f32 0.0, %v1349
        %v1351 = vpop.f32.mrb[0].mxu0
        %1352 = vmatprep.mubr.f32.mxu0 0.0
        %1353 = vmatmul.mubr.f32.gmra.mrb[0].mxu0 %v820
        %v1354 = vpop.f32.mrb[0].mxu0
        %v1355 = vadd.f32 0.0, %v1354
        %v1356 = vpop.f32.mrb[0].mxu0
        %1357 = vmatprep.mubr.f32.mxu0 0.0
        %1358 = vmatmul.mubr.f32.gmra.mrb[0].mxu0 %v823
        %v1359 = vpop.f32.mrb[0].mxu0
        %v1360 = vadd.f32 0.0, %v1359
        %v1361 = vpop.f32.mrb[0].mxu0
        %1362 = vmatprep.mubr.f32.mxu0 0.0
        %1363 = vmatmul.mubr.f32.gmra.mrb[0].mxu0 %v826
        %v1364 = vpop.f32.mrb[0].mxu0
        %v1365 = vadd.f32 0.0, %v1364
        %v1366 = vpop.f32.mrb[0].mxu0
        %1367 = vmatprep.mubr.f32.mxu0 0.0
        %1368 = vmatmul.mubr.f32.gmra.mrb[0].mxu0 %v829
        %v1369 = vpop.f32.mrb[0].mxu0
        %v1370 = vadd.f32 0.0, %v1369
        %v1371 = vpop.f32.mrb[0].mxu0
        %1372 = vmatprep.mubr.f32.mxu0 0.0
        %1373 = vmatmul.mubr.f32.gmra.mrb[0].mxu0 %v832
        %v1374 = vpop.f32.mrb[0].mxu0
        %v1375 = vadd.f32 0.0, %v1374
        %v1376 = vpop.f32.mrb[0].mxu0
        %1377 = vmatprep.mubr.f32.mxu0 0.0
        %1378 = vmatmul.mubr.f32.gmra.mrb[0].mxu0 %v835
        %v1379 = vpop.f32.mrb[0].mxu0
        %v1380 = vadd.f32 0.0, %v1379
        %v1381 = vpop.f32.mrb[0].mxu0
        %1382 = vmatprep.mubr.f32.mxu0 0.0
        %1383 = vmatmul.mubr.f32.gmra.mrb[0].mxu0 %v838
        %v1384 = vpop.f32.mrb[0].mxu0
        %v1385 = vadd.f32 0.0, %v1384
        %v1386 = vpop.f32.mrb[0].mxu0
        %1387 = vdwg.mxu0
        %1388 = vst [vmem:[%s279] sm:$0xff] %v907
        %1389 = vst [vmem:[%s279 + $0x8] sm:$0xff] %v909
        %vm1390 = vcmask 351232
        %1391 = vst.msk [vmem:[%s279 + $0x10] sm:$0xff] %vm1390, %v1200
        %1392 = vst [vmem:[%s279 + $0x18] sm:$0xff] %v913
        %1393 = vst [vmem:[%s279 + $0x20] sm:$0xff] %v915
        %1394 = vst.msk [vmem:[%s279 + $0x28] sm:$0xff] %vm1390, %v1205
        %1395 = vst [vmem:[%s279 + $0x30] sm:$0xff] %v919
        %1396 = vst [vmem:[%s279 + $0x38] sm:$0xff] %v921
        %1397 = vst.msk [vmem:[%s279 + $0x40] sm:$0xff] %vm1390, %v1210
        %1398 = vst [vmem:[%s279 + $0x48] sm:$0xff] %v925
        %1399 = vst [vmem:[%s279 + $0x50] sm:$0xff] %v927
        %1400 = vst.msk [vmem:[%s279 + $0x58] sm:$0xff] %vm1390, %v1215
        %1401 = vst [vmem:[%s279 + $0x60] sm:$0xff] %v931
        %1402 = vst [vmem:[%s279 + $0x68] sm:$0xff] %v933
        %1403 = vst.msk [vmem:[%s279 + $0x70] sm:$0xff] %vm1390, %v1220
        %1404 = vst [vmem:[%s279 + $0x78] sm:$0xff] %v937
        %1405 = vst [vmem:[%s279 + $0x80] sm:$0xff] %v939
        %1406 = vst.msk [vmem:[%s279 + $0x88] sm:$0xff] %vm1390, %v1225
        %1407 = vst [vmem:[%s279 + $0x90] sm:$0xff] %v943
        %1408 = vst [vmem:[%s279 + $0x98] sm:$0xff] %v945
        %1409 = vst.msk [vmem:[%s279 + $0xa0] sm:$0xff] %vm1390, %v1230
        %1410 = vst [vmem:[%s279 + $0xa8] sm:$0xff] %v949
        %1411 = vst [vmem:[%s279 + $0xb0] sm:$0xff] %v951
        %1412 = vst.msk [vmem:[%s279 + $0xb8] sm:$0xff] %vm1390, %v1235
        %1413 = vst [vmem:[%s279 + $0xc0] sm:$0xff] %v955
        %1414 = vst [vmem:[%s279 + $0xc8] sm:$0xff] %v957
        %1415 = vst.msk [vmem:[%s279 + $0xd0] sm:$0xff] %vm1390, %v1240
        %1416 = vst [vmem:[%s279 + $0xd8] sm:$0xff] %v961
        %1417 = vst [vmem:[%s279 + $0xe0] sm:$0xff] %v963
        %1418 = vst.msk [vmem:[%s279 + $0xe8] sm:$0xff] %vm1390, %v1245
        %1419 = vst [vmem:[%s279 + $0xf0] sm:$0xff] %v967
        %1420 = vst [vmem:[%s279 + $0xf8] sm:$0xff] %v969
        %1421 = vst.msk [vmem:[%s279 + $0x100] sm:$0xff] %vm1390, %v1250
        %1422 = vst [vmem:[%s279 + $0x108] sm:$0xff] %v973
        %1423 = vst [vmem:[%s279 + $0x110] sm:$0xff] %v975
        %1424 = vst.msk [vmem:[%s279 + $0x118] sm:$0xff] %vm1390, %v1255
        %1425 = vst [vmem:[%s279 + $0x120] sm:$0xff] %v979
        %1426 = vst [vmem:[%s279 + $0x128] sm:$0xff] %v981
        %1427 = vst.msk [vmem:[%s279 + $0x130] sm:$0xff] %vm1390, %v1260
        %1428 = vst [vmem:[%s279 + $0x138] sm:$0xff] %v985
        %1429 = vst [vmem:[%s279 + $0x140] sm:$0xff] %v987
        %1430 = vst.msk [vmem:[%s279 + $0x148] sm:$0xff] %vm1390, %v1265
        %1431 = vst [vmem:[%s279 + $0x150] sm:$0xff] %v991
        %1432 = vst [vmem:[%s279 + $0x158] sm:$0xff] %v993
        %1433 = vst.msk [vmem:[%s279 + $0x160] sm:$0xff] %vm1390, %v1270
        %1434 = vst [vmem:[%s279 + $0x168] sm:$0xff] %v997
        %1435 = vst [vmem:[%s279 + $0x170] sm:$0xff] %v999
        %1436 = vst.msk [vmem:[%s279 + $0x178] sm:$0xff] %vm1390, %v1275
        %1437 = vst [vmem:[%s279 + $0x180] sm:$0xff] %v1003
        %1438 = vst [vmem:[%s279 + $0x188] sm:$0xff] %v1005
        %1439 = vst.msk [vmem:[%s279 + $0x190] sm:$0xff] %vm1390, %v1280
        %1440 = vst [vmem:[%s279 + $0x198] sm:$0xff] %v1009
        %1441 = vst [vmem:[%s279 + $0x1a0] sm:$0xff] %v1011
        %1442 = vst.msk [vmem:[%s279 + $0x1a8] sm:$0xff] %vm1390, %v1285
        %1443 = vst [vmem:[%s279 + $0x1b0] sm:$0xff] %v1015
        %1444 = vst [vmem:[%s279 + $0x1b8] sm:$0xff] %v1017
        %1445 = vst.msk [vmem:[%s279 + $0x1c0] sm:$0xff] %vm1390, %v1290
        %1446 = vst [vmem:[%s279 + $0x1c8] sm:$0xff] %v1021
        %1447 = vst [vmem:[%s279 + $0x1d0] sm:$0xff] %v1023
        %1448 = vst.msk [vmem:[%s279 + $0x1d8] sm:$0xff] %vm1390, %v1295
        %1449 = vst [vmem:[%s279 + $0x1e0] sm:$0xff] %v1027
        %1450 = vst [vmem:[%s279 + $0x1e8] sm:$0xff] %v1029
        %1451 = vst.msk [vmem:[%s279 + $0x1f0] sm:$0xff] %vm1390, %v1300
        %1452 = vst [vmem:[%s279 + $0x1f8] sm:$0xff] %v1033
        %1453 = vst [vmem:[%s279 + $0x200] sm:$0xff] %v1035
        %1454 = vst.msk [vmem:[%s279 + $0x208] sm:$0xff] %vm1390, %v1305
        %1455 = vst [vmem:[%s279 + $0x210] sm:$0xff] %v1039
        %1456 = vst [vmem:[%s279 + $0x218] sm:$0xff] %v1041
        %1457 = vst.msk [vmem:[%s279 + $0x220] sm:$0xff] %vm1390, %v1310
        %1458 = vst [vmem:[%s279 + $0x228] sm:$0xff] %v1045
        %1459 = vst [vmem:[%s279 + $0x230] sm:$0xff] %v1047
        %1460 = vst.msk [vmem:[%s279 + $0x238] sm:$0xff] %vm1390, %v1315
        %1461 = vst [vmem:[%s279 + $0x240] sm:$0xff] %v1051
        %1462 = vst [vmem:[%s279 + $0x248] sm:$0xff] %v1053
        %1463 = vst.msk [vmem:[%s279 + $0x250] sm:$0xff] %vm1390, %v1320
        %1464 = vst [vmem:[%s279 + $0x258] sm:$0xff] %v1057
        %1465 = vst [vmem:[%s279 + $0x260] sm:$0xff] %v1059
        %1466 = vst.msk [vmem:[%s279 + $0x268] sm:$0xff] %vm1390, %v1325
        %1467 = vst [vmem:[%s279 + $0x270] sm:$0xff] %v1063
        %1468 = vst [vmem:[%s279 + $0x278] sm:$0xff] %v1065
        %1469 = vst.msk [vmem:[%s279 + $0x280] sm:$0xff] %vm1390, %v1330
        %1470 = vst [vmem:[%s279 + $0x288] sm:$0xff] %v1069
        %1471 = vst [vmem:[%s279 + $0x290] sm:$0xff] %v1071
        %1472 = vst.msk [vmem:[%s279 + $0x298] sm:$0xff] %vm1390, %v1335
        %1473 = vst [vmem:[%s279 + $0x2a0] sm:$0xff] %v1075
        %1474 = vst [vmem:[%s279 + $0x2a8] sm:$0xff] %v1077
        %1475 = vst.msk [vmem:[%s279 + $0x2b0] sm:$0xff] %vm1390, %v1340
        %1476 = vst [vmem:[%s279 + $0x2b8] sm:$0xff] %v1081
        %1477 = vst [vmem:[%s279 + $0x2c0] sm:$0xff] %v1083
        %1478 = vst.msk [vmem:[%s279 + $0x2c8] sm:$0xff] %vm1390, %v1345
        %1479 = vst [vmem:[%s279 + $0x2d0] sm:$0xff] %v1087
        %1480 = vst [vmem:[%s279 + $0x2d8] sm:$0xff] %v1089
        %1481 = vst.msk [vmem:[%s279 + $0x2e0] sm:$0xff] %vm1390, %v1350
        %1482 = vst [vmem:[%s279 + $0x2e8] sm:$0xff] %v1093
        %1483 = vst [vmem:[%s279 + $0x2f0] sm:$0xff] %v1095
        %1484 = vst.msk [vmem:[%s279 + $0x2f8] sm:$0xff] %vm1390, %v1355
        %1485 = vst [vmem:[%s279 + $0x300] sm:$0xff] %v1099
        %1486 = vst [vmem:[%s279 + $0x308] sm:$0xff] %v1101
        %1487 = vst.msk [vmem:[%s279 + $0x310] sm:$0xff] %vm1390, %v1360
        %1488 = vst [vmem:[%s279 + $0x318] sm:$0xff] %v1105
        %1489 = vst [vmem:[%s279 + $0x320] sm:$0xff] %v1107
        %1490 = vst.msk [vmem:[%s279 + $0x328] sm:$0xff] %vm1390, %v1365
        %1491 = vst [vmem:[%s279 + $0x330] sm:$0xff] %v1111
        %1492 = vst [vmem:[%s279 + $0x338] sm:$0xff] %v1113
        %1493 = vst.msk [vmem:[%s279 + $0x340] sm:$0xff] %vm1390, %v1370
        %1494 = vst [vmem:[%s279 + $0x348] sm:$0xff] %v1117
        %1495 = vst [vmem:[%s279 + $0x350] sm:$0xff] %v1119
        %1496 = vst.msk [vmem:[%s279 + $0x358] sm:$0xff] %vm1390, %v1375
        %1497 = vst [vmem:[%s279 + $0x360] sm:$0xff] %v1123
        %1498 = vst [vmem:[%s279 + $0x368] sm:$0xff] %v1125
        %1499 = vst.msk [vmem:[%s279 + $0x370] sm:$0xff] %vm1390, %v1380
        %1500 = vst [vmem:[%s279 + $0x378] sm:$0x7] %v1129
        %1501 = vst [vmem:[%s279 + $0x380] sm:$0x7] %v1131
        %vm1502 = vcmask 346112
        %1503 = vst.msk [vmem:[%s279 + $0x388] sm:$0x7] %vm1502, %v1385
        %s1504 = sand.u32 %s151, 1
        %s1505 = scalar_lea.sflag [#allocation4], %s1504
        %s1506 = sand.u32 %s151, 1
        %s1507 = smul.addr %s1506, 912
        %s1508 = scalar_lea.vmem [#allocation7], %s1507
        // Predicated region
        $region49: #{tpu_custom_call.1} parent=39 // pred_check
          %p1509 = pneg %p161
        $region50: #{tpu_custom_call.1} parent=39 // pred_check_branch
          %1511 = sbr.rel (%p1509) target = $region52
        $region51: #{tpu_custom_call.1} parent=39 // pred_region
          %s1513 = ssub.s32 14592, 14592
          %1514 = vsyncadd %s1505, %s1513
          %s1515 = smul.addr %s23, 114
          %s1516 = smul.addr %s1515, 128
          %s1517 = scalar_lea.hbm %s5, %s1516
          %s1518 = sshll.u32 %s1508, 4
          %s1519 = int_to_ptr.vmem [resolvable:$true] %s1518
          %1524 = dma.vmem_to_hbm [thread:$0]  %s1519, 14592, %s1517, %s1505, 384, 384, 24
        $region52: #{tpu_custom_call.1} parent=39 // pred_fallthru
          _
      $region40: #{tpu_custom_call.1} parent=5 // pred_fallthru
        _
      %p1525 = scmp.le.s32.totalorder 2, %s18
      // Predicated region
      $region53: #{tpu_custom_call.1} parent=5 // pred_check
        %p1526 = pneg %p1525
      $region54: #{tpu_custom_call.1} parent=5 // pred_check_branch
        %1528 = sbr.rel (%p1526) target = $region56
      $region55: #{tpu_custom_call.1} parent=5 // pred_region
        %s1529 = ssub.s32 %s18, 2
        // Predicated region
        $region57: #{tpu_custom_call.1} parent=55 // pred_check
          %p1530 = pneg %p167
        $region58: #{tpu_custom_call.1} parent=55 // pred_check_branch
          %1532 = sbr.rel (%p1530) target = $region60
        $region59: #{tpu_custom_call.1} parent=55 // pred_region
          %s1533 = sand.u32 %s152, 1
          %s1534 = scalar_lea.sflag [#allocation4], %s1533
          %s1535 = sand.u32 %s152, 1
          %s1536 = smul.addr %s1535, 912
          %s1537 = scalar_lea.vmem [#allocation7], %s1536
          %1538 = dma.done %s1534, 14592
        $region60: #{tpu_custom_call.1} parent=55 // pred_fallthru
          _
      $region56: #{tpu_custom_call.1} parent=5 // pred_fallthru
        _
    $region6: #{tpu_custom_call.1} parent=1 // loop_footer
      %s22 = sadd.s32 1, %s18
    $region7: #{tpu_custom_call.1} parent=1 // loop_footer_branch
      %17 = sbr.rel target = $region3
    $region8: #{tpu_custom_call.1} parent=1 // loop_exit
      _
    %1539 = vsyncpa [#allocation3], 1
    %s1540 = scalar_lea.sflag [#allocation3], 1
    %1541 = vsyncpa %s1540, 1
    %1542 = vsyncpa [#allocation6], 1
    %1543 = vsyncpa [#allocation4], 1
    %s1544 = scalar_lea.sflag [#allocation4], 1
    %1545 = vsyncpa %s1544, 1

</llo_original>
